<compile_context>
chip_gen: v7x
topology: tpu7x:2x2x1
jax: 0.10.0
libtpu: 0.0.40
codegen_flags: <defaults>
</compile_context>

<pallas_src>
import functools

import jax
import jax.numpy as jnp
from jax import lax
from jax.experimental import pallas as pl
from jax.experimental.pallas import tpu as pltpu


def _round_up(x, m):
    return ((x + m - 1) // m) * m


def _pick_tile(dim, candidates):
    for c in candidates:
        if c <= dim and dim % c == 0:
            return c
    return dim  # full extent is always a legal block


def _vmem_limit(estimate_bytes):
    # Explicit scoped-VMEM limit: at least the largest default (32 MiB), at
    # most the smallest physical VMEM across generations (v7x: 64 MiB).
    return int(min(64 * 2**20, max(32 * 2**20, int(1.5 * estimate_bytes))))


# ---------------------------------------------------------------------------
# Generic tiled matmul + bias:  out (M, N) = x (M, K) @ w (K, N) + b (1, N)
# Used for both the fused input projection and the vocab FC.
# ---------------------------------------------------------------------------
def _matmul_bias_kernel(x_ref, w_ref, b_ref, o_ref, acc_ref):
    k = pl.program_id(2)

    @pl.when(k == 0)
    def _():
        acc_ref[...] = jnp.zeros_like(acc_ref)

    acc_ref[...] += jnp.dot(x_ref[...], w_ref[...],
                            preferred_element_type=jnp.float32)

    @pl.when(k == pl.num_programs(2) - 1)
    def _():
        o_ref[...] = (acc_ref[...] + b_ref[...]).astype(o_ref.dtype)


def matmul_bias_pallas(x, w, b, *, out_dtype=jnp.float32, tm=256):
    """x: (M, K), w: (K, N), b: (1, N) -> (M, N) in `out_dtype`.

    M is padded up to a multiple of `tm` (review: a collapsed tm wastes the MXU
    M dimension and re-streams the weights); N / K tiles are 128-aligned.
    """
    m, k_dim = x.shape
    _, n = w.shape
    m_pad = _round_up(m, tm)
    if m_pad != m:
        x = jnp.pad(x, ((0, m_pad - m), (0, 0)))
    tn = _pick_tile(n, (512, 256, 128))
    tk = _pick_tile(k_dim, (512, 256, 128))

    est = (2 * (tm * tk * x.dtype.itemsize + tk * tn * w.dtype.itemsize + tn * 4)
           + tm * tn * 4                                   # f32 accumulator
           + 2 * tm * tn * jnp.dtype(out_dtype).itemsize)  # output buffers

    grid_spec = pltpu.PrefetchScalarGridSpec(
        num_scalar_prefetch=0,
        grid=(m_pad // tm, n // tn, k_dim // tk),
        in_specs=[
            pl.BlockSpec((tm, tk), lambda i, j, k: (i, k)),
            pl.BlockSpec((tk, tn), lambda i, j, k: (k, j)),
            pl.BlockSpec((1, tn), lambda i, j, k: (0, j)),
        ],
        out_specs=pl.BlockSpec((tm, tn), lambda i, j, k: (i, j)),
        scratch_shapes=[pltpu.VMEM((tm, tn), jnp.float32)],
    )
    out = pl.pallas_call(
        _matmul_bias_kernel,
        out_shape=jax.ShapeDtypeStruct((m_pad, n), out_dtype),
        grid_spec=grid_spec,
        compiler_params=pltpu.CompilerParams(
            dimension_semantics=("parallel", "parallel", "arbitrary"),
            vmem_limit_bytes=_vmem_limit(est)),
    )(x, w, b)
    return out if m_pad == m else out[:m]


# ---------------------------------------------------------------------------
# LSTM recurrence kernel: only h @ W_hh^T + precomputed input gates per step.
# Grid over time blocks (sequential); inner time loop is a fori_loop so the
# per-step live-vreg footprint stays bounded.
# ---------------------------------------------------------------------------
def _lstm_rec_kernel(gx_ref, h0_ref, c0_ref, whh_ref,
                     hid_ref, hfin_ref, cfin_ref,
                     h_scr, c_scr, *, hp, tt, seq_len):
    blk = pl.program_id(0)

    @pl.when(blk == 0)
    def _():
        h_scr[...] = h0_ref[...]
        c_scr[...] = c0_ref[...]

    needs_mask = (seq_len % tt) != 0
    mm_dtype = whh_ref.dtype

    def step(s, carry):
        h, c = carry
        # bf16 x bf16 MXU matmul, f32 accumulation; gate math stays f32.
        gates = gx_ref[s].astype(jnp.float32) + jnp.dot(
            h.astype(mm_dtype), whh_ref[...],
            preferred_element_type=jnp.float32)
        # Gate blocks are lane-aligned (each Hp is a multiple of 128).
        i_g = jax.nn.sigmoid(gates[:, 0 * hp:1 * hp])
        f_g = jax.nn.sigmoid(gates[:, 1 * hp:2 * hp])
        g_g = jnp.tanh(gates[:, 2 * hp:3 * hp])
        o_g = jax.nn.sigmoid(gates[:, 3 * hp:4 * hp])

        c_new = f_g * c + i_g * g_g
        h_new = o_g * jnp.tanh(c_new)

        if needs_mask:   # only when padded timesteps exist (static flag)
            valid = (blk * tt + s) < seq_len
            h_new = jnp.where(valid, h_new, h)
            c_new = jnp.where(valid, c_new, c)

        hid_ref[s] = h_new.astype(hid_ref.dtype)
        return h_new, c_new

    h, c = lax.fori_loop(0, tt, step, (h_scr[...], c_scr[...]), unroll=2)

    h_scr[...] = h
    c_scr[...] = c
    # Written unconditionally every block (cheap (Bp, Hp) store); the resident
    # constant-index output block keeps the last block's value.
    hfin_ref[...] = h
    cfin_ref[...] = c


def lstm_recurrence_pallas(gx, h0, c0, w_hh_p, *, hidden_pad, time_block,
                           seq_len, hidden_dtype=jnp.bfloat16):
    """gx: (T_pad, Bp, 4*Hp) precomputed input gates (+bias), time-major.
    Returns hidden (T_pad, Bp, Hp) in `hidden_dtype`, final h and final c
    (Bp, Hp) in float32."""
    t_pad, bp, g4 = gx.shape
    hp = hidden_pad
    nblk = t_pad // time_block

    kernel = functools.partial(_lstm_rec_kernel, hp=hp, tt=time_block,
                               seq_len=seq_len)

    est = (2 * time_block * bp * g4 * gx.dtype.itemsize          # gx blocks
           + 2 * hp * g4 * w_hh_p.dtype.itemsize                 # W_hh buffers
           + 2 * time_block * bp * hp * jnp.dtype(hidden_dtype).itemsize
           + 8 * bp * hp * 4                                     # h0/c0/hfin/cfin
           + 2 * bp * hp * 4)                                    # scratch h, c

    grid_spec = pltpu.PrefetchScalarGridSpec(
        num_scalar_prefetch=0,
        grid=(nblk,),
        in_specs=[
            pl.BlockSpec((time_block, bp, g4), lambda b: (b, 0, 0)),  # gx block
            # Grid-invariant inputs (constant index map -> fetched once).
            pl.BlockSpec((bp, hp), lambda b: (0, 0)),                 # h0
            pl.BlockSpec((bp, hp), lambda b: (0, 0)),                 # c0
            pl.BlockSpec((hp, g4), lambda b: (0, 0)),                 # W_hh^T
        ],
        out_specs=[
            pl.BlockSpec((time_block, bp, hp), lambda b: (b, 0, 0)),  # hidden
            pl.BlockSpec((bp, hp), lambda b: (0, 0)),                 # h final
            pl.BlockSpec((bp, hp), lambda b: (0, 0)),                 # c final
        ],
        scratch_shapes=[
            pltpu.VMEM((bp, hp), jnp.float32),   # h carry across time blocks
            pltpu.VMEM((bp, hp), jnp.float32),   # c carry across time blocks
        ],
    )
    return pl.pallas_call(
        kernel,
        out_shape=(
            jax.ShapeDtypeStruct((t_pad, bp, hp), hidden_dtype),
            jax.ShapeDtypeStruct((bp, hp), jnp.float32),
            jax.ShapeDtypeStruct((bp, hp), jnp.float32),
        ),
        grid_spec=grid_spec,
        compiler_params=pltpu.CompilerParams(
            dimension_semantics=("arbitrary",),   # strictly sequential recurrence
            vmem_limit_bytes=_vmem_limit(est)),
    )(gx, h0, c0, w_hh_p)


# ---------------------------------------------------------------------------
# Decoder module (plain-JAX glue around the Pallas hot paths).
# ---------------------------------------------------------------------------
class DecoderPallas:
    def __init__(self, feat_size, embed_size, vocab_size, hidden_size,
                 num_layers=1, key=None, time_block=32,
                 param_dtype=jnp.bfloat16):
        assert num_layers == 1, "kernel implements the num_layers=1 case"
        self.feat_size = feat_size
        self.embed_size = embed_size
        self.vocab_size = vocab_size
        self.hidden_size = hidden_size
        self.num_layers = num_layers
        self.time_block = time_block       # 32-64 on v6e, keep <=32 on v7x
        self.param_dtype = param_dtype

        if key is None:
            key = jax.random.PRNGKey(0)
        ks = jax.random.split(key, 6)
        d_in = feat_size + embed_size
        h = hidden_size
        bound = 1.0 / jnp.sqrt(jnp.float32(h))

        # Raw (PyTorch-shaped, transposed for x @ W^T) float32 parameters.
        self.embed_w = 0.02 * jax.random.normal(
            ks[0], (vocab_size, embed_size), jnp.float32)
        self.w_ih_t = jax.random.uniform(ks[1], (d_in, 4 * h), jnp.float32,
                                         -bound, bound)
        self.w_hh_t = jax.random.uniform(ks[2], (h, 4 * h), jnp.float32,
                                         -bound, bound)
        b_ih = jax.random.uniform(ks[3], (4 * h,), jnp.float32, -bound, bound)
        b_hh = jax.random.uniform(ks[4], (4 * h,), jnp.float32, -bound, bound)
        self.b_gates = b_ih + b_hh                       # (4H,)
        self.w_fc_t = jax.random.uniform(ks[5], (h, vocab_size), jnp.float32,
                                         -bound, bound)
        self.b_fc = jnp.zeros((vocab_size,), jnp.float32)

        # -------- Padded / packed parameters for the TPU kernels --------
        hp = _round_up(h, 128)
        vp = _round_up(vocab_size, 128)
        self.hp, self.vp = hp, vp

        def pad_gate_cols(w):    # (rows, 4H) -> (rows, 4Hp), lane-aligned gates
            rows = w.shape[0]
            out = jnp.zeros((rows, 4 * hp), jnp.float32)
            for g in range(4):
                out = out.at[:, g * hp:g * hp + h].set(w[:, g * h:(g + 1) * h])
            return out

        # bf16 packed weights (padded regions are exact zeros -> stay zero
        # after the cast); biases stay f32 (added after the f32 accumulation).
        self.w_ih_p = pad_gate_cols(self.w_ih_t).astype(param_dtype)     # (F+E, 4Hp)
        self.w_hh_p = (jnp.zeros((hp, 4 * hp), jnp.float32)
                       .at[:h].set(pad_gate_cols(self.w_hh_t))
                       ).astype(param_dtype)                             # (Hp, 4Hp)
        self.b_gates_p = pad_gate_cols(self.b_gates[None, :])            # (1, 4Hp) f32
        self.w_fc_p = (jnp.zeros((hp, vp), jnp.float32)
                       .at[:h, :vocab_size].set(self.w_fc_t)
                       ).astype(param_dtype)                             # (Hp, Vp)
        self.b_fc_p = jnp.zeros((1, vp), jnp.float32).at[0, :vocab_size].set(
            self.b_fc)                                                   # (1, Vp) f32

        self.h0 = None
        self.c0 = None

    def init_hidden(self, hc=None):
        if hc is None:
            self.h0 = jnp.zeros((self.num_layers, 1, self.hidden_size),
                                jnp.float32)
            self.c0 = jnp.zeros((self.num_layers, 1, self.hidden_size),
                                jnp.float32)
        else:
            self.h0, self.c0 = hc

    def forward(self, features, captions):
        # features: (B, T, feat_size) f32 ; captions: (B, T) int32
        b, t, f = features.shape
        h, hp, vp, v = self.hidden_size, self.hp, self.vp, self.vocab_size
        act_dtype = self.param_dtype
        # Batch padded to 16 so bf16 (16, 128) tiles are fully dense.
        bp = _round_up(b, 16)

        # --- nn.Embedding lookup + concat (plain-JAX glue), then ONE fused
        #     input projection over K = F+E (off the serial critical path) ---
        emb = jnp.take(self.embed_w, captions, axis=0)               # (B, T, E)
        x = jnp.concatenate((features, emb), axis=2)                 # (B, T, F+E)
        x_t = jnp.transpose(x, (1, 0, 2))                            # (T, B, D)
        x_t = jnp.pad(x_t, ((0, 0), (0, bp - b), (0, 0)))            # (T, Bp, D)
        gx = matmul_bias_pallas(
            x_t.reshape(t * bp, f + self.embed_size).astype(act_dtype),
            self.w_ih_p, self.b_gates_p, out_dtype=act_dtype)
        gx = gx.reshape(t, bp, 4 * hp)                               # (T, Bp, 4Hp)

        # --- time-blocked sequential recurrence ---
        tt = min(t, self.time_block)
        t_pad = _round_up(t, tt)
        if t_pad > t:
            gx = jnp.pad(gx, ((0, t_pad - t), (0, 0), (0, 0)))

        h0 = jnp.zeros((bp, hp), jnp.float32).at[:b, :h].set(
            jnp.broadcast_to(self.h0[0], (b, h)))
        c0 = jnp.zeros((bp, hp), jnp.float32).at[:b, :h].set(
            jnp.broadcast_to(self.c0[0], (b, h)))

        hidden_p, h_fin, c_fin = lstm_recurrence_pallas(
            gx, h0, c0, self.w_hh_p, hidden_pad=hp, time_block=tt,
            seq_len=t, hidden_dtype=act_dtype)

        # --- vocab FC: transpose the (small) hidden tensor to batch-major
        #     BEFORE the FC so logits come out (B, T, V)-contiguous ---
        hid_bm = jnp.transpose(hidden_p[:t], (1, 0, 2)).reshape(bp * t, hp)
        logits = matmul_bias_pallas(hid_bm, self.w_fc_p, self.b_fc_p,
                                    out_dtype=jnp.float32)
        outputs = logits.reshape(bp, t, vp)[:b, :, :v]               # (B, T, V)

        hs = h_fin[:b, :h][None]                                     # (1, B, H)
        cs = c_fin[:b, :h][None]                                     # (1, B, H)
        return outputs, (hs, cs)

    # TODO(synk): `sample()` (greedy, data-dependent-length decoding loop) is
    # host-side control flow in the reference module and is not implemented here.


# ---------------------------------------------------------------------------
# Pure-JAX float32 reference (for correctness checking only).
# ---------------------------------------------------------------------------
def _reference(dec, features, captions):
    b, t, _ = features.shape
    h = dec.hidden_size
    emb = jnp.take(dec.embed_w, captions, axis=0)
    x = jnp.concatenate((features, emb), axis=2)          # (B, T, D_in)

    def step(carry, x_t):
        hh, cc = carry
        gates = x_t @ dec.w_ih_t + hh @ dec.w_hh_t + dec.b_gates
        i = jax.nn.sigmoid(gates[:, :h])
        f = jax.nn.sigmoid(gates[:, h:2 * h])
        g = jnp.tanh(gates[:, 2 * h:3 * h])
        o = jax.nn.sigmoid(gates[:, 3 * h:])
        cc = f * cc + i * g
        hh = o * jnp.tanh(cc)
        return (hh, cc), hh

    h0 = jnp.broadcast_to(dec.h0[0], (b, h))
    c0 = jnp.broadcast_to(dec.c0[0], (b, h))
    (hs, cs), hidden = jax.lax.scan(step, (h0, c0), jnp.transpose(x, (1, 0, 2)))
    hidden = jnp.transpose(hidden, (1, 0, 2))             # (B, T, H)
    outputs = hidden @ dec.w_fc_t + dec.b_fc
    return outputs, (hs[None], cs[None])


if __name__ == "__main__":
    feat_size, embed_size, vocab_size, hidden_size = 16, 16, 32, 32
    B, T = 2, 8

    key = jax.random.PRNGKey(0)
    k_feat, k_cap, k_par = jax.random.split(key, 3)
    features = jax.random.normal(k_feat, (B, T, feat_size), jnp.float32)
    captions = jax.random.randint(k_cap, (B, T), 0, vocab_size, jnp.int32)

    dec = DecoderPallas(feat_size, embed_size, vocab_size, hidden_size,
                        num_layers=1, key=k_par)
    dec.init_hidden()

    outputs, (hs, cs) = dec.forward(features, captions)
    jax.block_until_ready((outputs, hs, cs))

    assert outputs.shape == (B, T, vocab_size)
    assert hs.shape == (1, B, hidden_size) and cs.shape == (1, B, hidden_size)

    ref_out, (ref_hs, ref_cs) = _reference(dec, features, captions)
    # bf16 weights / streamed activations vs float32 reference -> looser tol.
    tol = dict(rtol=3e-2, atol=3e-2)
    assert jnp.allclose(outputs, ref_out, **tol), float(
        jnp.max(jnp.abs(outputs - ref_out)))
    assert jnp.allclose(hs, ref_hs, **tol), float(jnp.max(jnp.abs(hs - ref_hs)))
    assert jnp.allclose(cs, ref_cs, **tol), float(jnp.max(jnp.abs(cs - ref_cs)))

    print("KERNEL_OK")
</pallas_src>

<mosaic_0001>
module attributes {stable_mosaic.version = 11 : i64} {
  func.func @_matmul_bias_kernel(%arg0: i32, %arg1: i32, %arg2: i32, %arg3: memref<256x32xbf16, #tpu.memory_space<vmem>>, %arg4: memref<32x512xbf16, #tpu.memory_space<vmem>>, %arg5: memref<1x512xf32, #tpu.memory_space<vmem>>, %arg6: memref<256x512xbf16, #tpu.memory_space<vmem>>, %arg7: memref<256x512xf32, #tpu.memory_space<vmem>>) attributes {dimension_semantics = [#tpu.dimension_semantics<parallel>, #tpu.dimension_semantics<parallel>, #tpu.dimension_semantics<arbitrary>], iteration_bounds = array<i64: 1, 1, 1>, scalar_prefetch = 0 : i64, scratch_operands = 1 : i64, tpu.core_type = #tpu.core_type<tc>, window_params = [{transform_indices = @transform_0, window_bounds = array<i64: 256, 32>}, {transform_indices = @transform_1, window_bounds = array<i64: 32, 512>}, {transform_indices = @transform_2, window_bounds = array<i64: 1, 512>}, {transform_indices = @transform_3, window_bounds = array<i64: 256, 512>}]} {
    %c0_i32 = arith.constant 0 : i32
    %0 = arith.cmpi eq, %arg2, %c0_i32 : i32
    %1 = arith.extui %0 : i1 to i32
    %c0_i32_0 = arith.constant 0 : i32
    %2 = arith.cmpi ne, %1, %c0_i32_0 : i32
    scf.if %2 {
      %cst_10 = arith.constant 0.000000e+00 : f32
      %12 = vector.broadcast %cst_10 : f32 to vector<256x512xf32>
      %c0_11 = arith.constant 0 : index
      %c0_12 = arith.constant 0 : index
      %13 = vector.load %arg7[%c0_11, %c0_12] : memref<256x512xf32, #tpu.memory_space<vmem>>, vector<256x512xf32>
      tpu.vector_store %arg7[%c0_11, %c0_12], %12 {strides = array<i32>} : memref<256x512xf32, #tpu.memory_space<vmem>>, vector<256x512xf32>,
    } else {
    }
    %c0 = arith.constant 0 : index
    %c0_1 = arith.constant 0 : index
    %3 = vector.load %arg7[%c0, %c0_1] : memref<256x512xf32, #tpu.memory_space<vmem>>, vector<256x512xf32>
    %c0_2 = arith.constant 0 : index
    %c0_3 = arith.constant 0 : index
    %4 = vector.load %arg3[%c0_2, %c0_3] : memref<256x32xbf16, #tpu.memory_space<vmem>>, vector<256x32xbf16>
    %c0_4 = arith.constant 0 : index
    %c0_5 = arith.constant 0 : index
    %5 = vector.load %arg4[%c0_4, %c0_5] : memref<32x512xbf16, #tpu.memory_space<vmem>>, vector<32x512xbf16>
    %cst = arith.constant dense<0.000000e+00> : vector<256x512xf32>
    %6 = tpu.matmul %4, %5, %cst {dimension_numbers = #tpu.dot_dimension_numbers<[1], [0], [0], [1], [0, 0, 1, 1], [], []>} : vector<256x32xbf16>, vector<32x512xbf16>, vector<256x512xf32> -> vector<256x512xf32>
    %7 = arith.addf %3, %6 : vector<256x512xf32>
    %c0_6 = arith.constant 0 : index
    %c0_7 = arith.constant 0 : index
    %8 = vector.load %arg7[%c0_6, %c0_7] : memref<256x512xf32, #tpu.memory_space<vmem>>, vector<256x512xf32>
    tpu.vector_store %arg7[%c0_6, %c0_7], %7 {strides = array<i32>} : memref<256x512xf32, #tpu.memory_space<vmem>>, vector<256x512xf32>,
    %c0_i32_8 = arith.constant 0 : i32
    %9 = arith.cmpi eq, %arg2, %c0_i32_8 : i32
    %10 = arith.extui %9 : i1 to i32
    %c0_i32_9 = arith.constant 0 : i32
    %11 = arith.cmpi ne, %10, %c0_i32_9 : i32
    scf.if %11 {
      %c0_10 = arith.constant 0 : index
      %c0_11 = arith.constant 0 : index
      %12 = vector.load %arg7[%c0_10, %c0_11] : memref<256x512xf32, #tpu.memory_space<vmem>>, vector<256x512xf32>
      %c0_12 = arith.constant 0 : index
      %c0_13 = arith.constant 0 : index
      %13 = vector.load %arg5[%c0_12, %c0_13] : memref<1x512xf32, #tpu.memory_space<vmem>>, vector<1x512xf32>
      %14 = vector.broadcast %13 : vector<1x512xf32> to vector<256x512xf32>
      %15 = arith.addf %12, %14 : vector<256x512xf32>
      %16 = arith.truncf %15 : vector<256x512xf32> to vector<256x512xbf16>
      %c0_14 = arith.constant 0 : index
      %c0_15 = arith.constant 0 : index
      %17 = vector.load %arg6[%c0_14, %c0_15] : memref<256x512xbf16, #tpu.memory_space<vmem>>, vector<256x512xbf16>
      tpu.vector_store %arg6[%c0_14, %c0_15], %16 {strides = array<i32>} : memref<256x512xbf16, #tpu.memory_space<vmem>>, vector<256x512xbf16>,
    } else {
    }
    return
  }
  func.func @transform_0(%arg0: i32, %arg1: i32, %arg2: i32) -> (i32, i32) {
    %c0_i32 = arith.constant 0 : i32
    return %arg0, %arg2 : i32, i32
  }
  func.func @transform_1(%arg0: i32, %arg1: i32, %arg2: i32) -> (i32, i32) {
    %c0_i32 = arith.constant 0 : i32
    return %arg2, %arg1 : i32, i32
  }
  func.func @transform_2(%arg0: i32, %arg1: i32, %arg2: i32) -> (i32, i32) {
    %c0_i32 = arith.constant 0 : i32
    %c0_i32_0 = arith.constant 0 : i32
    return %c0_i32, %arg1 : i32, i32
  }
  func.func @transform_3(%arg0: i32, %arg1: i32, %arg2: i32) -> (i32, i32) {
    %c0_i32 = arith.constant 0 : i32
    return %arg0, %arg1 : i32, i32
  }
}

</mosaic_0001>

<llo_original>
// kernel: tpu_custom_call.1
$region0: #{tpu_custom_call.1}
  #allocation0 [shape = 'u32[]', space=smem, size = 0x4, offset = 0x4, fixed_abs, tag = 'smem constant byte address 0x4 - core index']
  #allocation1 [shape = 'u32[144,128]{1,0:T(1,128)}', space=vmem, size = 0x12000, scoped, tag = 'internal scratch']
  #allocation2 [shape = 'f32[256,512]{1,0:T(8,128)}', space=vmem, size = 0x80000, scoped, tag = 'scratch operand']
  %s0 = inlined_call_operand.vmem [shape: bf16[256,32], index: 0, kind: input, shape index: {}]
  %s1 = inlined_call_operand.vmem [shape: bf16[32,512], index: 1, kind: input, shape index: {}]
  %s2 = inlined_call_operand.vmem [shape: f32[1,512], index: 2, kind: input, shape index: {}]
  %s3 = inlined_call_operand.hbm [shape: bf16[256,512], index: 3, kind: output, shape index: {}]
  %s4 = sld [smem:[#allocation0]]
  $region30: #{tpu_custom_call.1} parent=0
    _
  %s6 = ssub.s32 1, %s4
  %s7 = scalar_select 0, %s6, %s4
  $region1: #{tpu_custom_call.1} parent=0
    #allocation3 [shape = 'u8[262144]{0}', space=vmem, size = 0x40000, scoped, tag = 'output window, operand 0, single buffered']
    #allocation4 [shape = 's32[1]{0}', space=sflag, size = 0x4, scoped, tag = 'scoped memory for tpu_custom_call.1']
    %8 = vsyncpa [#allocation4], 0
    // Predicated region
    $region2: #{tpu_custom_call.1} parent=1 // pred_check
      _
    $region3: #{tpu_custom_call.1} parent=1 // pred_check_branch
      %10 = sbr.rel (0) target = $region5
    $region4: #{tpu_custom_call.1} parent=1 // pred_region
      _
    $region5: #{tpu_custom_call.1} parent=1 // pred_fallthru
      _
    // Predicated region
    $region6: #{tpu_custom_call.1} parent=1 // pred_check
      _
    $region7: #{tpu_custom_call.1} parent=1 // pred_check_branch
      %12 = sbr.rel (0) target = $region9
    $region8: #{tpu_custom_call.1} parent=1 // pred_region
      _
    $region9: #{tpu_custom_call.1} parent=1 // pred_fallthru
      _
    // Predicated region
    $region10: #{tpu_custom_call.1} parent=1 // pred_check
      _
    $region11: #{tpu_custom_call.1} parent=1 // pred_check_branch
      %14 = sbr.rel (0) target = $region13
    $region12: #{tpu_custom_call.1} parent=1 // pred_region
      _
    $region13: #{tpu_custom_call.1} parent=1 // pred_fallthru
      _
    %p16 = scmp.eq.s32.totalorder 0, 0
    // Predicated region
    $region14: #{tpu_custom_call.1} parent=1 // pred_check
      %p17 = pneg %p16
    $region15: #{tpu_custom_call.1} parent=1 // pred_check_branch
      %19 = sbr.rel (%p17) target = $region17
    $region16: #{tpu_custom_call.1} parent=1 // pred_region
      %20 = vst [vmem:[#allocation2] sm:$0xff] 0.0
      %21 = vst [vmem:[#allocation2 + $0x8] sm:$0xff] 0.0
      %22 = vst [vmem:[#allocation2 + $0x10] sm:$0xff] 0.0
      %23 = vst [vmem:[#allocation2 + $0x18] sm:$0xff] 0.0
      %24 = vst [vmem:[#allocation2 + $0x20] sm:$0xff] 0.0
      %25 = vst [vmem:[#allocation2 + $0x28] sm:$0xff] 0.0
      %26 = vst [vmem:[#allocation2 + $0x30] sm:$0xff] 0.0
      %27 = vst [vmem:[#allocation2 + $0x38] sm:$0xff] 0.0
      %28 = vst [vmem:[#allocation2 + $0x40] sm:$0xff] 0.0
      %29 = vst [vmem:[#allocation2 + $0x48] sm:$0xff] 0.0
      %30 = vst [vmem:[#allocation2 + $0x50] sm:$0xff] 0.0
      %31 = vst [vmem:[#allocation2 + $0x58] sm:$0xff] 0.0
      %32 = vst [vmem:[#allocation2 + $0x60] sm:$0xff] 0.0
      %33 = vst [vmem:[#allocation2 + $0x68] sm:$0xff] 0.0
      %34 = vst [vmem:[#allocation2 + $0x70] sm:$0xff] 0.0
      %35 = vst [vmem:[#allocation2 + $0x78] sm:$0xff] 0.0
      %36 = vst [vmem:[#allocation2 + $0x80] sm:$0xff] 0.0
      %37 = vst [vmem:[#allocation2 + $0x88] sm:$0xff] 0.0
      %38 = vst [vmem:[#allocation2 + $0x90] sm:$0xff] 0.0
      %39 = vst [vmem:[#allocation2 + $0x98] sm:$0xff] 0.0
      %40 = vst [vmem:[#allocation2 + $0xa0] sm:$0xff] 0.0
      %41 = vst [vmem:[#allocation2 + $0xa8] sm:$0xff] 0.0
      %42 = vst [vmem:[#allocation2 + $0xb0] sm:$0xff] 0.0
      %43 = vst [vmem:[#allocation2 + $0xb8] sm:$0xff] 0.0
      %44 = vst [vmem:[#allocation2 + $0xc0] sm:$0xff] 0.0
      %45 = vst [vmem:[#allocation2 + $0xc8] sm:$0xff] 0.0
      %46 = vst [vmem:[#allocation2 + $0xd0] sm:$0xff] 0.0
      %47 = vst [vmem:[#allocation2 + $0xd8] sm:$0xff] 0.0
      %48 = vst [vmem:[#allocation2 + $0xe0] sm:$0xff] 0.0
      %49 = vst [vmem:[#allocation2 + $0xe8] sm:$0xff] 0.0
      %50 = vst [vmem:[#allocation2 + $0xf0] sm:$0xff] 0.0
      %51 = vst [vmem:[#allocation2 + $0xf8] sm:$0xff] 0.0
      %52 = vst [vmem:[#allocation2 + $0x100] sm:$0xff] 0.0
      %53 = vst [vmem:[#allocation2 + $0x108] sm:$0xff] 0.0
      %54 = vst [vmem:[#allocation2 + $0x110] sm:$0xff] 0.0
      %55 = vst [vmem:[#allocation2 + $0x118] sm:$0xff] 0.0
      %56 = vst [vmem:[#allocation2 + $0x120] sm:$0xff] 0.0
      %57 = vst [vmem:[#allocation2 + $0x128] sm:$0xff] 0.0
      %58 = vst [vmem:[#allocation2 + $0x130] sm:$0xff] 0.0
      %59 = vst [vmem:[#allocation2 + $0x138] sm:$0xff] 0.0
      %60 = vst [vmem:[#allocation2 + $0x140] sm:$0xff] 0.0
      %61 = vst [vmem:[#allocation2 + $0x148] sm:$0xff] 0.0
      %62 = vst [vmem:[#allocation2 + $0x150] sm:$0xff] 0.0
      %63 = vst [vmem:[#allocation2 + $0x158] sm:$0xff] 0.0
      %64 = vst [vmem:[#allocation2 + $0x160] sm:$0xff] 0.0
      %65 = vst [vmem:[#allocation2 + $0x168] sm:$0xff] 0.0
      %66 = vst [vmem:[#allocation2 + $0x170] sm:$0xff] 0.0
      %67 = vst [vmem:[#allocation2 + $0x178] sm:$0xff] 0.0
      %68 = vst [vmem:[#allocation2 + $0x180] sm:$0xff] 0.0
      %69 = vst [vmem:[#allocation2 + $0x188] sm:$0xff] 0.0
      %70 = vst [vmem:[#allocation2 + $0x190] sm:$0xff] 0.0
      %71 = vst [vmem:[#allocation2 + $0x198] sm:$0xff] 0.0
      %72 = vst [vmem:[#allocation2 + $0x1a0] sm:$0xff] 0.0
      %73 = vst [vmem:[#allocation2 + $0x1a8] sm:$0xff] 0.0
      %74 = vst [vmem:[#allocation2 + $0x1b0] sm:$0xff] 0.0
      %75 = vst [vmem:[#allocation2 + $0x1b8] sm:$0xff] 0.0
      %76 = vst [vmem:[#allocation2 + $0x1c0] sm:$0xff] 0.0
      %77 = vst [vmem:[#allocation2 + $0x1c8] sm:$0xff] 0.0
      %78 = vst [vmem:[#allocation2 + $0x1d0] sm:$0xff] 0.0
      %79 = vst [vmem:[#allocation2 + $0x1d8] sm:$0xff] 0.0
      %80 = vst [vmem:[#allocation2 + $0x1e0] sm:$0xff] 0.0
      %81 = vst [vmem:[#allocation2 + $0x1e8] sm:$0xff] 0.0
      %82 = vst [vmem:[#allocation2 + $0x1f0] sm:$0xff] 0.0
      %83 = vst [vmem:[#allocation2 + $0x1f8] sm:$0xff] 0.0
      %84 = vst [vmem:[#allocation2 + $0x200] sm:$0xff] 0.0
      %85 = vst [vmem:[#allocation2 + $0x208] sm:$0xff] 0.0
      %86 = vst [vmem:[#allocation2 + $0x210] sm:$0xff] 0.0
      %87 = vst [vmem:[#allocation2 + $0x218] sm:$0xff] 0.0
      %88 = vst [vmem:[#allocation2 + $0x220] sm:$0xff] 0.0
      %89 = vst [vmem:[#allocation2 + $0x228] sm:$0xff] 0.0
      %90 = vst [vmem:[#allocation2 + $0x230] sm:$0xff] 0.0
      %91 = vst [vmem:[#allocation2 + $0x238] sm:$0xff] 0.0
      %92 = vst [vmem:[#allocation2 + $0x240] sm:$0xff] 0.0
      %93 = vst [vmem:[#allocation2 + $0x248] sm:$0xff] 0.0
      %94 = vst [vmem:[#allocation2 + $0x250] sm:$0xff] 0.0
      %95 = vst [vmem:[#allocation2 + $0x258] sm:$0xff] 0.0
      %96 = vst [vmem:[#allocation2 + $0x260] sm:$0xff] 0.0
      %97 = vst [vmem:[#allocation2 + $0x268] sm:$0xff] 0.0
      %98 = vst [vmem:[#allocation2 + $0x270] sm:$0xff] 0.0
      %99 = vst [vmem:[#allocation2 + $0x278] sm:$0xff] 0.0
      %100 = vst [vmem:[#allocation2 + $0x280] sm:$0xff] 0.0
      %101 = vst [vmem:[#allocation2 + $0x288] sm:$0xff] 0.0
      %102 = vst [vmem:[#allocation2 + $0x290] sm:$0xff] 0.0
      %103 = vst [vmem:[#allocation2 + $0x298] sm:$0xff] 0.0
      %104 = vst [vmem:[#allocation2 + $0x2a0] sm:$0xff] 0.0
      %105 = vst [vmem:[#allocation2 + $0x2a8] sm:$0xff] 0.0
      %106 = vst [vmem:[#allocation2 + $0x2b0] sm:$0xff] 0.0
      %107 = vst [vmem:[#allocation2 + $0x2b8] sm:$0xff] 0.0
      %108 = vst [vmem:[#allocation2 + $0x2c0] sm:$0xff] 0.0
      %109 = vst [vmem:[#allocation2 + $0x2c8] sm:$0xff] 0.0
      %110 = vst [vmem:[#allocation2 + $0x2d0] sm:$0xff] 0.0
      %111 = vst [vmem:[#allocation2 + $0x2d8] sm:$0xff] 0.0
      %112 = vst [vmem:[#allocation2 + $0x2e0] sm:$0xff] 0.0
      %113 = vst [vmem:[#allocation2 + $0x2e8] sm:$0xff] 0.0
      %114 = vst [vmem:[#allocation2 + $0x2f0] sm:$0xff] 0.0
      %115 = vst [vmem:[#allocation2 + $0x2f8] sm:$0xff] 0.0
      %116 = vst [vmem:[#allocation2 + $0x300] sm:$0xff] 0.0
      %117 = vst [vmem:[#allocation2 + $0x308] sm:$0xff] 0.0
      %118 = vst [vmem:[#allocation2 + $0x310] sm:$0xff] 0.0
      %119 = vst [vmem:[#allocation2 + $0x318] sm:$0xff] 0.0
      %120 = vst [vmem:[#allocation2 + $0x320] sm:$0xff] 0.0
      %121 = vst [vmem:[#allocation2 + $0x328] sm:$0xff] 0.0
      %122 = vst [vmem:[#allocation2 + $0x330] sm:$0xff] 0.0
      %123 = vst [vmem:[#allocation2 + $0x338] sm:$0xff] 0.0
      %124 = vst [vmem:[#allocation2 + $0x340] sm:$0xff] 0.0
      %125 = vst [vmem:[#allocation2 + $0x348] sm:$0xff] 0.0
      %126 = vst [vmem:[#allocation2 + $0x350] sm:$0xff] 0.0
      %127 = vst [vmem:[#allocation2 + $0x358] sm:$0xff] 0.0
      %128 = vst [vmem:[#allocation2 + $0x360] sm:$0xff] 0.0
      %129 = vst [vmem:[#allocation2 + $0x368] sm:$0xff] 0.0
      %130 = vst [vmem:[#allocation2 + $0x370] sm:$0xff] 0.0
      %131 = vst [vmem:[#allocation2 + $0x378] sm:$0xff] 0.0
      %132 = vst [vmem:[#allocation2 + $0x380] sm:$0xff] 0.0
      %133 = vst [vmem:[#allocation2 + $0x388] sm:$0xff] 0.0
      %134 = vst [vmem:[#allocation2 + $0x390] sm:$0xff] 0.0
      %135 = vst [vmem:[#allocation2 + $0x398] sm:$0xff] 0.0
      %136 = vst [vmem:[#allocation2 + $0x3a0] sm:$0xff] 0.0
      %137 = vst [vmem:[#allocation2 + $0x3a8] sm:$0xff] 0.0
      %138 = vst [vmem:[#allocation2 + $0x3b0] sm:$0xff] 0.0
      %139 = vst [vmem:[#allocation2 + $0x3b8] sm:$0xff] 0.0
      %140 = vst [vmem:[#allocation2 + $0x3c0] sm:$0xff] 0.0
      %141 = vst [vmem:[#allocation2 + $0x3c8] sm:$0xff] 0.0
      %142 = vst [vmem:[#allocation2 + $0x3d0] sm:$0xff] 0.0
      %143 = vst [vmem:[#allocation2 + $0x3d8] sm:$0xff] 0.0
      %144 = vst [vmem:[#allocation2 + $0x3e0] sm:$0xff] 0.0
      %145 = vst [vmem:[#allocation2 + $0x3e8] sm:$0xff] 0.0
      %146 = vst [vmem:[#allocation2 + $0x3f0] sm:$0xff] 0.0
      %147 = vst [vmem:[#allocation2 + $0x3f8] sm:$0xff] 0.0
    $region17: #{tpu_custom_call.1} parent=1 // pred_fallthru
      _
    %v148 = vld [vmem:[#allocation2] sm:$0xff]
    %v149 = vld [vmem:[#allocation2 + $0x8] sm:$0xff]
    %v150 = vld [vmem:[#allocation2 + $0x10] sm:$0xff]
    %v151 = vld [vmem:[#allocation2 + $0x18] sm:$0xff]
    %v152 = vld [vmem:[#allocation2 + $0x20] sm:$0xff]
    %v153 = vld [vmem:[#allocation2 + $0x28] sm:$0xff]
    %v154 = vld [vmem:[#allocation2 + $0x30] sm:$0xff]
    %v155 = vld [vmem:[#allocation2 + $0x38] sm:$0xff]
    %v156 = vld [vmem:[#allocation2 + $0x40] sm:$0xff]
    %v157 = vld [vmem:[#allocation2 + $0x48] sm:$0xff]
    %v158 = vld [vmem:[#allocation2 + $0x50] sm:$0xff]
    %v159 = vld [vmem:[#allocation2 + $0x58] sm:$0xff]
    %v160 = vld [vmem:[#allocation2 + $0x60] sm:$0xff]
    %v161 = vld [vmem:[#allocation2 + $0x68] sm:$0xff]
    %v162 = vld [vmem:[#allocation2 + $0x70] sm:$0xff]
    %v163 = vld [vmem:[#allocation2 + $0x78] sm:$0xff]
    %v164 = vld [vmem:[#allocation2 + $0x80] sm:$0xff]
    %v165 = vld [vmem:[#allocation2 + $0x88] sm:$0xff]
    %v166 = vld [vmem:[#allocation2 + $0x90] sm:$0xff]
    %v167 = vld [vmem:[#allocation2 + $0x98] sm:$0xff]
    %v168 = vld [vmem:[#allocation2 + $0xa0] sm:$0xff]
    %v169 = vld [vmem:[#allocation2 + $0xa8] sm:$0xff]
    %v170 = vld [vmem:[#allocation2 + $0xb0] sm:$0xff]
    %v171 = vld [vmem:[#allocation2 + $0xb8] sm:$0xff]
    %v172 = vld [vmem:[#allocation2 + $0xc0] sm:$0xff]
    %v173 = vld [vmem:[#allocation2 + $0xc8] sm:$0xff]
    %v174 = vld [vmem:[#allocation2 + $0xd0] sm:$0xff]
    %v175 = vld [vmem:[#allocation2 + $0xd8] sm:$0xff]
    %v176 = vld [vmem:[#allocation2 + $0xe0] sm:$0xff]
    %v177 = vld [vmem:[#allocation2 + $0xe8] sm:$0xff]
    %v178 = vld [vmem:[#allocation2 + $0xf0] sm:$0xff]
    %v179 = vld [vmem:[#allocation2 + $0xf8] sm:$0xff]
    %v180 = vld [vmem:[#allocation2 + $0x100] sm:$0xff]
    %v181 = vld [vmem:[#allocation2 + $0x108] sm:$0xff]
    %v182 = vld [vmem:[#allocation2 + $0x110] sm:$0xff]
    %v183 = vld [vmem:[#allocation2 + $0x118] sm:$0xff]
    %v184 = vld [vmem:[#allocation2 + $0x120] sm:$0xff]
    %v185 = vld [vmem:[#allocation2 + $0x128] sm:$0xff]
    %v186 = vld [vmem:[#allocation2 + $0x130] sm:$0xff]
    %v187 = vld [vmem:[#allocation2 + $0x138] sm:$0xff]
    %v188 = vld [vmem:[#allocation2 + $0x140] sm:$0xff]
    %v189 = vld [vmem:[#allocation2 + $0x148] sm:$0xff]
    %v190 = vld [vmem:[#allocation2 + $0x150] sm:$0xff]
    %v191 = vld [vmem:[#allocation2 + $0x158] sm:$0xff]
    %v192 = vld [vmem:[#allocation2 + $0x160] sm:$0xff]
    %v193 = vld [vmem:[#allocation2 + $0x168] sm:$0xff]
    %v194 = vld [vmem:[#allocation2 + $0x170] sm:$0xff]
    %v195 = vld [vmem:[#allocation2 + $0x178] sm:$0xff]
    %v196 = vld [vmem:[#allocation2 + $0x180] sm:$0xff]
    %v197 = vld [vmem:[#allocation2 + $0x188] sm:$0xff]
    %v198 = vld [vmem:[#allocation2 + $0x190] sm:$0xff]
    %v199 = vld [vmem:[#allocation2 + $0x198] sm:$0xff]
    %v200 = vld [vmem:[#allocation2 + $0x1a0] sm:$0xff]
    %v201 = vld [vmem:[#allocation2 + $0x1a8] sm:$0xff]
    %v202 = vld [vmem:[#allocation2 + $0x1b0] sm:$0xff]
    %v203 = vld [vmem:[#allocation2 + $0x1b8] sm:$0xff]
    %v204 = vld [vmem:[#allocation2 + $0x1c0] sm:$0xff]
    %v205 = vld [vmem:[#allocation2 + $0x1c8] sm:$0xff]
    %v206 = vld [vmem:[#allocation2 + $0x1d0] sm:$0xff]
    %v207 = vld [vmem:[#allocation2 + $0x1d8] sm:$0xff]
    %v208 = vld [vmem:[#allocation2 + $0x1e0] sm:$0xff]
    %v209 = vld [vmem:[#allocation2 + $0x1e8] sm:$0xff]
    %v210 = vld [vmem:[#allocation2 + $0x1f0] sm:$0xff]
    %v211 = vld [vmem:[#allocation2 + $0x1f8] sm:$0xff]
    %v212 = vld [vmem:[#allocation2 + $0x200] sm:$0xff]
    %v213 = vld [vmem:[#allocation2 + $0x208] sm:$0xff]
    %v214 = vld [vmem:[#allocation2 + $0x210] sm:$0xff]
    %v215 = vld [vmem:[#allocation2 + $0x218] sm:$0xff]
    %v216 = vld [vmem:[#allocation2 + $0x220] sm:$0xff]
    %v217 = vld [vmem:[#allocation2 + $0x228] sm:$0xff]
    %v218 = vld [vmem:[#allocation2 + $0x230] sm:$0xff]
    %v219 = vld [vmem:[#allocation2 + $0x238] sm:$0xff]
    %v220 = vld [vmem:[#allocation2 + $0x240] sm:$0xff]
    %v221 = vld [vmem:[#allocation2 + $0x248] sm:$0xff]
    %v222 = vld [vmem:[#allocation2 + $0x250] sm:$0xff]
    %v223 = vld [vmem:[#allocation2 + $0x258] sm:$0xff]
    %v224 = vld [vmem:[#allocation2 + $0x260] sm:$0xff]
    %v225 = vld [vmem:[#allocation2 + $0x268] sm:$0xff]
    %v226 = vld [vmem:[#allocation2 + $0x270] sm:$0xff]
    %v227 = vld [vmem:[#allocation2 + $0x278] sm:$0xff]
    %v228 = vld [vmem:[#allocation2 + $0x280] sm:$0xff]
    %v229 = vld [vmem:[#allocation2 + $0x288] sm:$0xff]
    %v230 = vld [vmem:[#allocation2 + $0x290] sm:$0xff]
    %v231 = vld [vmem:[#allocation2 + $0x298] sm:$0xff]
    %v232 = vld [vmem:[#allocation2 + $0x2a0] sm:$0xff]
    %v233 = vld [vmem:[#allocation2 + $0x2a8] sm:$0xff]
    %v234 = vld [vmem:[#allocation2 + $0x2b0] sm:$0xff]
    %v235 = vld [vmem:[#allocation2 + $0x2b8] sm:$0xff]
    %v236 = vld [vmem:[#allocation2 + $0x2c0] sm:$0xff]
    %v237 = vld [vmem:[#allocation2 + $0x2c8] sm:$0xff]
    %v238 = vld [vmem:[#allocation2 + $0x2d0] sm:$0xff]
    %v239 = vld [vmem:[#allocation2 + $0x2d8] sm:$0xff]
    %v240 = vld [vmem:[#allocation2 + $0x2e0] sm:$0xff]
    %v241 = vld [vmem:[#allocation2 + $0x2e8] sm:$0xff]
    %v242 = vld [vmem:[#allocation2 + $0x2f0] sm:$0xff]
    %v243 = vld [vmem:[#allocation2 + $0x2f8] sm:$0xff]
    %v244 = vld [vmem:[#allocation2 + $0x300] sm:$0xff]
    %v245 = vld [vmem:[#allocation2 + $0x308] sm:$0xff]
    %v246 = vld [vmem:[#allocation2 + $0x310] sm:$0xff]
    %v247 = vld [vmem:[#allocation2 + $0x318] sm:$0xff]
    %v248 = vld [vmem:[#allocation2 + $0x320] sm:$0xff]
    %v249 = vld [vmem:[#allocation2 + $0x328] sm:$0xff]
    %v250 = vld [vmem:[#allocation2 + $0x330] sm:$0xff]
    %v251 = vld [vmem:[#allocation2 + $0x338] sm:$0xff]
    %v252 = vld [vmem:[#allocation2 + $0x340] sm:$0xff]
    %v253 = vld [vmem:[#allocation2 + $0x348] sm:$0xff]
    %v254 = vld [vmem:[#allocation2 + $0x350] sm:$0xff]
    %v255 = vld [vmem:[#allocation2 + $0x358] sm:$0xff]
    %v256 = vld [vmem:[#allocation2 + $0x360] sm:$0xff]
    %v257 = vld [vmem:[#allocation2 + $0x368] sm:$0xff]
    %v258 = vld [vmem:[#allocation2 + $0x370] sm:$0xff]
    %v259 = vld [vmem:[#allocation2 + $0x378] sm:$0xff]
    %v260 = vld [vmem:[#allocation2 + $0x380] sm:$0xff]
    %v261 = vld [vmem:[#allocation2 + $0x388] sm:$0xff]
    %v262 = vld [vmem:[#allocation2 + $0x390] sm:$0xff]
    %v263 = vld [vmem:[#allocation2 + $0x398] sm:$0xff]
    %v264 = vld [vmem:[#allocation2 + $0x3a0] sm:$0xff]
    %v265 = vld [vmem:[#allocation2 + $0x3a8] sm:$0xff]
    %v266 = vld [vmem:[#allocation2 + $0x3b0] sm:$0xff]
    %v267 = vld [vmem:[#allocation2 + $0x3b8] sm:$0xff]
    %v268 = vld [vmem:[#allocation2 + $0x3c0] sm:$0xff]
    %v269 = vld [vmem:[#allocation2 + $0x3c8] sm:$0xff]
    %v270 = vld [vmem:[#allocation2 + $0x3d0] sm:$0xff]
    %v271 = vld [vmem:[#allocation2 + $0x3d8] sm:$0xff]
    %v272 = vld [vmem:[#allocation2 + $0x3e0] sm:$0xff]
    %v273 = vld [vmem:[#allocation2 + $0x3e8] sm:$0xff]
    %v274 = vld [vmem:[#allocation2 + $0x3f0] sm:$0xff]
    %v275 = vld [vmem:[#allocation2 + $0x3f8] sm:$0xff]
    %v276 = vld [vmem:[%s0] sm:$0xf]
    %v277 = vld [vmem:[%s0 + $0x4] sm:$0xf]
    %v278 = vld [vmem:[%s0 + $0x8] sm:$0xf]
    %v279 = vld [vmem:[%s0 + $0xc] sm:$0xf]
    %v280 = vld [vmem:[%s0 + $0x10] sm:$0xf]
    %v281 = vld [vmem:[%s0 + $0x14] sm:$0xf]
    %v282 = vld [vmem:[%s0 + $0x18] sm:$0xf]
    %v283 = vld [vmem:[%s0 + $0x1c] sm:$0xf]
    %v284 = vld [vmem:[%s0 + $0x20] sm:$0xf]
    %v285 = vld [vmem:[%s0 + $0x24] sm:$0xf]
    %v286 = vld [vmem:[%s0 + $0x28] sm:$0xf]
    %v287 = vld [vmem:[%s0 + $0x2c] sm:$0xf]
    %v288 = vld [vmem:[%s0 + $0x30] sm:$0xf]
    %v289 = vld [vmem:[%s0 + $0x34] sm:$0xf]
    %v290 = vld [vmem:[%s0 + $0x38] sm:$0xf]
    %v291 = vld [vmem:[%s0 + $0x3c] sm:$0xf]
    %v292 = vld [vmem:[%s0 + $0x40] sm:$0xf]
    %v293 = vld [vmem:[%s0 + $0x44] sm:$0xf]
    %v294 = vld [vmem:[%s0 + $0x48] sm:$0xf]
    %v295 = vld [vmem:[%s0 + $0x4c] sm:$0xf]
    %v296 = vld [vmem:[%s0 + $0x50] sm:$0xf]
    %v297 = vld [vmem:[%s0 + $0x54] sm:$0xf]
    %v298 = vld [vmem:[%s0 + $0x58] sm:$0xf]
    %v299 = vld [vmem:[%s0 + $0x5c] sm:$0xf]
    %v300 = vld [vmem:[%s0 + $0x60] sm:$0xf]
    %v301 = vld [vmem:[%s0 + $0x64] sm:$0xf]
    %v302 = vld [vmem:[%s0 + $0x68] sm:$0xf]
    %v303 = vld [vmem:[%s0 + $0x6c] sm:$0xf]
    %v304 = vld [vmem:[%s0 + $0x70] sm:$0xf]
    %v305 = vld [vmem:[%s0 + $0x74] sm:$0xf]
    %v306 = vld [vmem:[%s0 + $0x78] sm:$0xf]
    %v307 = vld [vmem:[%s0 + $0x7c] sm:$0xf]
    %v308 = vld [vmem:[%s1] sm:$0xff]
    %v309 = vld [vmem:[%s1 + $0x8] sm:$0xff]
    %v310 = vld [vmem:[%s1 + $0x10] sm:$0xff]
    %v311 = vld [vmem:[%s1 + $0x18] sm:$0xff]
    %v312 = vld [vmem:[%s1 + $0x20] sm:$0xff]
    %v313 = vld [vmem:[%s1 + $0x28] sm:$0xff]
    %v314 = vld [vmem:[%s1 + $0x30] sm:$0xff]
    %v315 = vld [vmem:[%s1 + $0x38] sm:$0xff]
    %v348 = vunpack.c.l.b16 %v276
    %v349 = vunpack.c.l.b16 %v277
    %v350 = vunpack.c.l.b16 %v278
    %v351 = vunpack.c.l.b16 %v279
    %v352 = vunpack.c.l.b16 %v280
    %v353 = vunpack.c.l.b16 %v281
    %v354 = vunpack.c.l.b16 %v282
    %v355 = vunpack.c.l.b16 %v283
    %v356 = vunpack.c.l.b16 %v284
    %v357 = vunpack.c.l.b16 %v285
    %v358 = vunpack.c.l.b16 %v286
    %v359 = vunpack.c.l.b16 %v287
    %v360 = vunpack.c.l.b16 %v288
    %v361 = vunpack.c.l.b16 %v289
    %v362 = vunpack.c.l.b16 %v290
    %v363 = vunpack.c.l.b16 %v291
    %v364 = vunpack.c.l.b16 %v292
    %v365 = vunpack.c.l.b16 %v293
    %v366 = vunpack.c.l.b16 %v294
    %v367 = vunpack.c.l.b16 %v295
    %v368 = vunpack.c.l.b16 %v296
    %v369 = vunpack.c.l.b16 %v297
    %v370 = vunpack.c.l.b16 %v298
    %v371 = vunpack.c.l.b16 %v299
    %v372 = vunpack.c.l.b16 %v300
    %v373 = vunpack.c.l.b16 %v301
    %v374 = vunpack.c.l.b16 %v302
    %v375 = vunpack.c.l.b16 %v303
    %v376 = vunpack.c.l.b16 %v304
    %v377 = vunpack.c.l.b16 %v305
    %v378 = vunpack.c.l.b16 %v306
    %v379 = vunpack.c.l.b16 %v307
    %v380 = vpack.c.b16 %v349, %v348
    %v381 = vpack.c.b16 %v351, %v350
    %v382 = vpack.c.b16 %v353, %v352
    %v383 = vpack.c.b16 %v355, %v354
    %v384 = vpack.c.b16 %v357, %v356
    %v385 = vpack.c.b16 %v359, %v358
    %v386 = vpack.c.b16 %v361, %v360
    %v387 = vpack.c.b16 %v363, %v362
    %v388 = vpack.c.b16 %v365, %v364
    %v389 = vpack.c.b16 %v367, %v366
    %v390 = vpack.c.b16 %v369, %v368
    %v391 = vpack.c.b16 %v371, %v370
    %v392 = vpack.c.b16 %v373, %v372
    %v393 = vpack.c.b16 %v375, %v374
    %v394 = vpack.c.b16 %v377, %v376
    %v395 = vpack.c.b16 %v379, %v378
    %v404 = vunpack.c.l.b16 %v308
    %v405 = vunpack.c.h.b16 %v308
    %v406 = vunpack.c.l.b16 %v309
    %v407 = vunpack.c.h.b16 %v309
    %v408 = vunpack.c.l.b16 %v310
    %v409 = vunpack.c.h.b16 %v310
    %v410 = vunpack.c.l.b16 %v311
    %v411 = vunpack.c.h.b16 %v311
    %v412 = vunpack.c.l.b16 %v312
    %v413 = vunpack.c.h.b16 %v312
    %v414 = vunpack.c.l.b16 %v313
    %v415 = vunpack.c.h.b16 %v313
    %v416 = vunpack.c.l.b16 %v314
    %v417 = vunpack.c.h.b16 %v314
    %v418 = vunpack.c.l.b16 %v315
    %v419 = vunpack.c.h.b16 %v315
    %v420 = vpack.c.b16 %v408, %v404
    %v421 = vpack.c.b16 %v409, %v405
    %v422 = vpack.c.b16 %v410, %v406
    %v423 = vpack.c.b16 %v411, %v407
    %v424 = vpack.c.b16 %v416, %v412
    %v425 = vpack.c.b16 %v417, %v413
    %v426 = vpack.c.b16 %v418, %v414
    %v427 = vpack.c.b16 %v419, %v415
    %vm436 = vcmask 261120
    %v438 = vsel %vm436, %v380, 0
    %v441 = vsel %vm436, %v381, 0
    %v444 = vsel %vm436, %v382, 0
    %v447 = vsel %vm436, %v383, 0
    %v450 = vsel %vm436, %v384, 0
    %v453 = vsel %vm436, %v385, 0
    %v456 = vsel %vm436, %v386, 0
    %v459 = vsel %vm436, %v387, 0
    %v462 = vsel %vm436, %v388, 0
    %v465 = vsel %vm436, %v389, 0
    %v468 = vsel %vm436, %v390, 0
    %v471 = vsel %vm436, %v391, 0
    %v474 = vsel %vm436, %v392, 0
    %v477 = vsel %vm436, %v393, 0
    %v480 = vsel %vm436, %v394, 0
    %v483 = vsel %vm436, %v395, 0
    %485 = vmatprep.subr.bf16.mxu0 %v421
    %486 = vmatpush1.bf16.msra.mxu0 %v420
    %487 = vmatprep.subr.bf16.mxu0 %v425
    %488 = vmatpush1.bf16.msra.mxu0 %v424
    %489 = vmatprep.subr.bf16.mxu0 0
    %490 = vmatpush1.bf16.msra.mxu0 0
    %491 = vmatprep.subr.bf16.mxu0 0
    %492 = vmatpush1.bf16.msra.mxu0 0
    %493 = vmatprep.subr.bf16.mxu0 0
    %494 = vmatpush1.bf16.msra.mxu0 0
    %495 = vmatprep.subr.bf16.mxu0 0
    %496 = vmatpush1.bf16.msra.mxu0 0
    %497 = vmatprep.subr.bf16.mxu0 0
    %498 = vmatpush1.bf16.msra.mxu0 0
    %499 = vmatprep.subr.bf16.mxu0 0
    %500 = vmatpush1.bf16.msra.mxu0 0
    %501 = vmatprep.subr.bf16.mxu0 0
    %502 = vmatpush1.bf16.msra.mxu0 0
    %503 = vmatprep.subr.bf16.mxu0 0
    %504 = vmatpush1.bf16.msra.mxu0 0
    %505 = vmatprep.subr.bf16.mxu0 0
    %506 = vmatpush1.bf16.msra.mxu0 0
    %507 = vmatprep.subr.bf16.mxu0 0
    %508 = vmatpush1.bf16.msra.mxu0 0
    %509 = vmatprep.subr.bf16.mxu0 0
    %510 = vmatpush1.bf16.msra.mxu0 0
    %511 = vmatprep.subr.bf16.mxu0 0
    %512 = vmatpush1.bf16.msra.mxu0 0
    %513 = vmatprep.subr.bf16.mxu0 0
    %514 = vmatpush1.bf16.msra.mxu0 0
    %515 = vmatprep.subr.bf16.mxu0 0
    %516 = vmatpush1.bf16.msra.mxu0 0
    %517 = vmatprep.mubr.bf16.mxu0 0
    %518 = vmatmul.mubr.bf16.gmra.mrb[0].mxu0 %v438
    %v519 = vpop.f32.mrb[0].mxu0
    %v520 = vadd.f32 0.0, %v519
    %v521 = vpop.f32.mrb[0].mxu0
    %v522 = vadd.f32 0.0, %v521
    %v523 = vpop.f32.mrb[0].mxu0
    %v524 = vadd.f32 0.0, %v523
    %v525 = vpop.f32.mrb[0].mxu0
    %v526 = vadd.f32 0.0, %v525
    %527 = vmatprep.mubr.bf16.mxu0 0
    %528 = vmatmul.mubr.bf16.gmra.mrb[0].mxu0 %v441
    %v529 = vpop.f32.mrb[0].mxu0
    %v530 = vadd.f32 0.0, %v529
    %v531 = vpop.f32.mrb[0].mxu0
    %v532 = vadd.f32 0.0, %v531
    %v533 = vpop.f32.mrb[0].mxu0
    %v534 = vadd.f32 0.0, %v533
    %v535 = vpop.f32.mrb[0].mxu0
    %v536 = vadd.f32 0.0, %v535
    %537 = vmatprep.mubr.bf16.mxu0 0
    %538 = vmatmul.mubr.bf16.gmra.mrb[0].mxu0 %v444
    %v539 = vpop.f32.mrb[0].mxu0
    %v540 = vadd.f32 0.0, %v539
    %v541 = vpop.f32.mrb[0].mxu0
    %v542 = vadd.f32 0.0, %v541
    %v543 = vpop.f32.mrb[0].mxu0
    %v544 = vadd.f32 0.0, %v543
    %v545 = vpop.f32.mrb[0].mxu0
    %v546 = vadd.f32 0.0, %v545
    %547 = vmatprep.mubr.bf16.mxu0 0
    %548 = vmatmul.mubr.bf16.gmra.mrb[0].mxu0 %v447
    %v549 = vpop.f32.mrb[0].mxu0
    %v550 = vadd.f32 0.0, %v549
    %v551 = vpop.f32.mrb[0].mxu0
    %v552 = vadd.f32 0.0, %v551
    %v553 = vpop.f32.mrb[0].mxu0
    %v554 = vadd.f32 0.0, %v553
    %v555 = vpop.f32.mrb[0].mxu0
    %v556 = vadd.f32 0.0, %v555
    %557 = vmatprep.mubr.bf16.mxu0 0
    %558 = vmatmul.mubr.bf16.gmra.mrb[0].mxu0 %v450
    %v559 = vpop.f32.mrb[0].mxu0
    %v560 = vadd.f32 0.0, %v559
    %v561 = vpop.f32.mrb[0].mxu0
    %v562 = vadd.f32 0.0, %v561
    %v563 = vpop.f32.mrb[0].mxu0
    %v564 = vadd.f32 0.0, %v563
    %v565 = vpop.f32.mrb[0].mxu0
    %v566 = vadd.f32 0.0, %v565
    %567 = vmatprep.mubr.bf16.mxu0 0
    %568 = vmatmul.mubr.bf16.gmra.mrb[0].mxu0 %v453
    %v569 = vpop.f32.mrb[0].mxu0
    %v570 = vadd.f32 0.0, %v569
    %v571 = vpop.f32.mrb[0].mxu0
    %v572 = vadd.f32 0.0, %v571
    %v573 = vpop.f32.mrb[0].mxu0
    %v574 = vadd.f32 0.0, %v573
    %v575 = vpop.f32.mrb[0].mxu0
    %v576 = vadd.f32 0.0, %v575
    %577 = vmatprep.mubr.bf16.mxu0 0
    %578 = vmatmul.mubr.bf16.gmra.mrb[0].mxu0 %v456
    %v579 = vpop.f32.mrb[0].mxu0
    %v580 = vadd.f32 0.0, %v579
    %v581 = vpop.f32.mrb[0].mxu0
    %v582 = vadd.f32 0.0, %v581
    %v583 = vpop.f32.mrb[0].mxu0
    %v584 = vadd.f32 0.0, %v583
    %v585 = vpop.f32.mrb[0].mxu0
    %v586 = vadd.f32 0.0, %v585
    %587 = vmatprep.mubr.bf16.mxu0 0
    %588 = vmatmul.mubr.bf16.gmra.mrb[0].mxu0 %v459
    %v589 = vpop.f32.mrb[0].mxu0
    %v590 = vadd.f32 0.0, %v589
    %v591 = vpop.f32.mrb[0].mxu0
    %v592 = vadd.f32 0.0, %v591
    %v593 = vpop.f32.mrb[0].mxu0
    %v594 = vadd.f32 0.0, %v593
    %v595 = vpop.f32.mrb[0].mxu0
    %v596 = vadd.f32 0.0, %v595
    %597 = vmatprep.mubr.bf16.mxu0 0
    %598 = vmatmul.mubr.bf16.gmra.mrb[0].mxu0 %v462
    %v599 = vpop.f32.mrb[0].mxu0
    %v600 = vadd.f32 0.0, %v599
    %v601 = vpop.f32.mrb[0].mxu0
    %v602 = vadd.f32 0.0, %v601
    %v603 = vpop.f32.mrb[0].mxu0
    %v604 = vadd.f32 0.0, %v603
    %v605 = vpop.f32.mrb[0].mxu0
    %v606 = vadd.f32 0.0, %v605
    %607 = vmatprep.mubr.bf16.mxu0 0
    %608 = vmatmul.mubr.bf16.gmra.mrb[0].mxu0 %v465
    %v609 = vpop.f32.mrb[0].mxu0
    %v610 = vadd.f32 0.0, %v609
    %v611 = vpop.f32.mrb[0].mxu0
    %v612 = vadd.f32 0.0, %v611
    %v613 = vpop.f32.mrb[0].mxu0
    %v614 = vadd.f32 0.0, %v613
    %v615 = vpop.f32.mrb[0].mxu0
    %v616 = vadd.f32 0.0, %v615
    %617 = vmatprep.mubr.bf16.mxu0 0
    %618 = vmatmul.mubr.bf16.gmra.mrb[0].mxu0 %v468
    %v619 = vpop.f32.mrb[0].mxu0
    %v620 = vadd.f32 0.0, %v619
    %v621 = vpop.f32.mrb[0].mxu0
    %v622 = vadd.f32 0.0, %v621
    %v623 = vpop.f32.mrb[0].mxu0
    %v624 = vadd.f32 0.0, %v623
    %v625 = vpop.f32.mrb[0].mxu0
    %v626 = vadd.f32 0.0, %v625
    %627 = vmatprep.mubr.bf16.mxu0 0
    %628 = vmatmul.mubr.bf16.gmra.mrb[0].mxu0 %v471
    %v629 = vpop.f32.mrb[0].mxu0
    %v630 = vadd.f32 0.0, %v629
    %v631 = vpop.f32.mrb[0].mxu0
    %v632 = vadd.f32 0.0, %v631
    %v633 = vpop.f32.mrb[0].mxu0
    %v634 = vadd.f32 0.0, %v633
    %v635 = vpop.f32.mrb[0].mxu0
    %v636 = vadd.f32 0.0, %v635
    %637 = vmatprep.mubr.bf16.mxu0 0
    %638 = vmatmul.mubr.bf16.gmra.mrb[0].mxu0 %v474
    %v639 = vpop.f32.mrb[0].mxu0
    %v640 = vadd.f32 0.0, %v639
    %v641 = vpop.f32.mrb[0].mxu0
    %v642 = vadd.f32 0.0, %v641
    %v643 = vpop.f32.mrb[0].mxu0
    %v644 = vadd.f32 0.0, %v643
    %v645 = vpop.f32.mrb[0].mxu0
    %v646 = vadd.f32 0.0, %v645
    %647 = vmatprep.mubr.bf16.mxu0 0
    %648 = vmatmul.mubr.bf16.gmra.mrb[0].mxu0 %v477
    %v649 = vpop.f32.mrb[0].mxu0
    %v650 = vadd.f32 0.0, %v649
    %v651 = vpop.f32.mrb[0].mxu0
    %v652 = vadd.f32 0.0, %v651
    %v653 = vpop.f32.mrb[0].mxu0
    %v654 = vadd.f32 0.0, %v653
    %v655 = vpop.f32.mrb[0].mxu0
    %v656 = vadd.f32 0.0, %v655
    %657 = vmatprep.mubr.bf16.mxu0 0
    %658 = vmatmul.mubr.bf16.gmra.mrb[0].mxu0 %v480
    %v659 = vpop.f32.mrb[0].mxu0
    %v660 = vadd.f32 0.0, %v659
    %v661 = vpop.f32.mrb[0].mxu0
    %v662 = vadd.f32 0.0, %v661
    %v663 = vpop.f32.mrb[0].mxu0
    %v664 = vadd.f32 0.0, %v663
    %v665 = vpop.f32.mrb[0].mxu0
    %v666 = vadd.f32 0.0, %v665
    %667 = vmatprep.mubr.bf16.mxu0 0
    %668 = vmatmul.mubr.bf16.gmra.mrb[0].mxu0 %v483
    %v669 = vpop.f32.mrb[0].mxu0
    %v670 = vadd.f32 0.0, %v669
    %v671 = vpop.f32.mrb[0].mxu0
    %v672 = vadd.f32 0.0, %v671
    %v673 = vpop.f32.mrb[0].mxu0
    %v674 = vadd.f32 0.0, %v673
    %v675 = vpop.f32.mrb[0].mxu0
    %v676 = vadd.f32 0.0, %v675
    %677 = vdwg.mxu0
    %678 = vmatprep.subr.bf16.mxu0 %v423
    %679 = vmatpush1.bf16.msra.mxu0 %v422
    %680 = vmatprep.subr.bf16.mxu0 %v427
    %681 = vmatpush1.bf16.msra.mxu0 %v426
    %682 = vmatprep.subr.bf16.mxu0 0
    %683 = vmatpush1.bf16.msra.mxu0 0
    %684 = vmatprep.subr.bf16.mxu0 0
    %685 = vmatpush1.bf16.msra.mxu0 0
    %686 = vmatprep.subr.bf16.mxu0 0
    %687 = vmatpush1.bf16.msra.mxu0 0
    %688 = vmatprep.subr.bf16.mxu0 0
    %689 = vmatpush1.bf16.msra.mxu0 0
    %690 = vmatprep.subr.bf16.mxu0 0
    %691 = vmatpush1.bf16.msra.mxu0 0
    %692 = vmatprep.subr.bf16.mxu0 0
    %693 = vmatpush1.bf16.msra.mxu0 0
    %694 = vmatprep.subr.bf16.mxu0 0
    %695 = vmatpush1.bf16.msra.mxu0 0
    %696 = vmatprep.subr.bf16.mxu0 0
    %697 = vmatpush1.bf16.msra.mxu0 0
    %698 = vmatprep.subr.bf16.mxu0 0
    %699 = vmatpush1.bf16.msra.mxu0 0
    %700 = vmatprep.subr.bf16.mxu0 0
    %701 = vmatpush1.bf16.msra.mxu0 0
    %702 = vmatprep.subr.bf16.mxu0 0
    %703 = vmatpush1.bf16.msra.mxu0 0
    %704 = vmatprep.subr.bf16.mxu0 0
    %705 = vmatpush1.bf16.msra.mxu0 0
    %706 = vmatprep.subr.bf16.mxu0 0
    %707 = vmatpush1.bf16.msra.mxu0 0
    %708 = vmatprep.subr.bf16.mxu0 0
    %709 = vmatpush1.bf16.msra.mxu0 0
    %710 = vmatprep.mubr.bf16.mxu0 0
    %711 = vmatmul.mubr.bf16.gmra.mrb[0].mxu0 %v438
    %v712 = vpop.f32.mrb[0].mxu0
    %v713 = vadd.f32 0.0, %v712
    %v714 = vpop.f32.mrb[0].mxu0
    %v715 = vadd.f32 0.0, %v714
    %v716 = vpop.f32.mrb[0].mxu0
    %v717 = vadd.f32 0.0, %v716
    %v718 = vpop.f32.mrb[0].mxu0
    %v719 = vadd.f32 0.0, %v718
    %720 = vmatprep.mubr.bf16.mxu0 0
    %721 = vmatmul.mubr.bf16.gmra.mrb[0].mxu0 %v441
    %v722 = vpop.f32.mrb[0].mxu0
    %v723 = vadd.f32 0.0, %v722
    %v724 = vpop.f32.mrb[0].mxu0
    %v725 = vadd.f32 0.0, %v724
    %v726 = vpop.f32.mrb[0].mxu0
    %v727 = vadd.f32 0.0, %v726
    %v728 = vpop.f32.mrb[0].mxu0
    %v729 = vadd.f32 0.0, %v728
    %730 = vmatprep.mubr.bf16.mxu0 0
    %731 = vmatmul.mubr.bf16.gmra.mrb[0].mxu0 %v444
    %v732 = vpop.f32.mrb[0].mxu0
    %v733 = vadd.f32 0.0, %v732
    %v734 = vpop.f32.mrb[0].mxu0
    %v735 = vadd.f32 0.0, %v734
    %v736 = vpop.f32.mrb[0].mxu0
    %v737 = vadd.f32 0.0, %v736
    %v738 = vpop.f32.mrb[0].mxu0
    %v739 = vadd.f32 0.0, %v738
    %740 = vmatprep.mubr.bf16.mxu0 0
    %741 = vmatmul.mubr.bf16.gmra.mrb[0].mxu0 %v447
    %v742 = vpop.f32.mrb[0].mxu0
    %v743 = vadd.f32 0.0, %v742
    %v744 = vpop.f32.mrb[0].mxu0
    %v745 = vadd.f32 0.0, %v744
    %v746 = vpop.f32.mrb[0].mxu0
    %v747 = vadd.f32 0.0, %v746
    %v748 = vpop.f32.mrb[0].mxu0
    %v749 = vadd.f32 0.0, %v748
    %750 = vmatprep.mubr.bf16.mxu0 0
    %751 = vmatmul.mubr.bf16.gmra.mrb[0].mxu0 %v450
    %v752 = vpop.f32.mrb[0].mxu0
    %v753 = vadd.f32 0.0, %v752
    %v754 = vpop.f32.mrb[0].mxu0
    %v755 = vadd.f32 0.0, %v754
    %v756 = vpop.f32.mrb[0].mxu0
    %v757 = vadd.f32 0.0, %v756
    %v758 = vpop.f32.mrb[0].mxu0
    %v759 = vadd.f32 0.0, %v758
    %760 = vmatprep.mubr.bf16.mxu0 0
    %761 = vmatmul.mubr.bf16.gmra.mrb[0].mxu0 %v453
    %v762 = vpop.f32.mrb[0].mxu0
    %v763 = vadd.f32 0.0, %v762
    %v764 = vpop.f32.mrb[0].mxu0
    %v765 = vadd.f32 0.0, %v764
    %v766 = vpop.f32.mrb[0].mxu0
    %v767 = vadd.f32 0.0, %v766
    %v768 = vpop.f32.mrb[0].mxu0
    %v769 = vadd.f32 0.0, %v768
    %770 = vmatprep.mubr.bf16.mxu0 0
    %771 = vmatmul.mubr.bf16.gmra.mrb[0].mxu0 %v456
    %v772 = vpop.f32.mrb[0].mxu0
    %v773 = vadd.f32 0.0, %v772
    %v774 = vpop.f32.mrb[0].mxu0
    %v775 = vadd.f32 0.0, %v774
    %v776 = vpop.f32.mrb[0].mxu0
    %v777 = vadd.f32 0.0, %v776
    %v778 = vpop.f32.mrb[0].mxu0
    %v779 = vadd.f32 0.0, %v778
    %780 = vmatprep.mubr.bf16.mxu0 0
    %781 = vmatmul.mubr.bf16.gmra.mrb[0].mxu0 %v459
    %v782 = vpop.f32.mrb[0].mxu0
    %v783 = vadd.f32 0.0, %v782
    %v784 = vpop.f32.mrb[0].mxu0
    %v785 = vadd.f32 0.0, %v784
    %v786 = vpop.f32.mrb[0].mxu0
    %v787 = vadd.f32 0.0, %v786
    %v788 = vpop.f32.mrb[0].mxu0
    %v789 = vadd.f32 0.0, %v788
    %790 = vmatprep.mubr.bf16.mxu0 0
    %791 = vmatmul.mubr.bf16.gmra.mrb[0].mxu0 %v462
    %v792 = vpop.f32.mrb[0].mxu0
    %v793 = vadd.f32 0.0, %v792
    %v794 = vpop.f32.mrb[0].mxu0
    %v795 = vadd.f32 0.0, %v794
    %v796 = vpop.f32.mrb[0].mxu0
    %v797 = vadd.f32 0.0, %v796
    %v798 = vpop.f32.mrb[0].mxu0
    %v799 = vadd.f32 0.0, %v798
    %800 = vmatprep.mubr.bf16.mxu0 0
    %801 = vmatmul.mubr.bf16.gmra.mrb[0].mxu0 %v465
    %v802 = vpop.f32.mrb[0].mxu0
    %v803 = vadd.f32 0.0, %v802
    %v804 = vpop.f32.mrb[0].mxu0
    %v805 = vadd.f32 0.0, %v804
    %v806 = vpop.f32.mrb[0].mxu0
    %v807 = vadd.f32 0.0, %v806
    %v808 = vpop.f32.mrb[0].mxu0
    %v809 = vadd.f32 0.0, %v808
    %810 = vmatprep.mubr.bf16.mxu0 0
    %811 = vmatmul.mubr.bf16.gmra.mrb[0].mxu0 %v468
    %v812 = vpop.f32.mrb[0].mxu0
    %v813 = vadd.f32 0.0, %v812
    %v814 = vpop.f32.mrb[0].mxu0
    %v815 = vadd.f32 0.0, %v814
    %v816 = vpop.f32.mrb[0].mxu0
    %v817 = vadd.f32 0.0, %v816
    %v818 = vpop.f32.mrb[0].mxu0
    %v819 = vadd.f32 0.0, %v818
    %820 = vmatprep.mubr.bf16.mxu0 0
    %821 = vmatmul.mubr.bf16.gmra.mrb[0].mxu0 %v471
    %v822 = vpop.f32.mrb[0].mxu0
    %v823 = vadd.f32 0.0, %v822
    %v824 = vpop.f32.mrb[0].mxu0
    %v825 = vadd.f32 0.0, %v824
    %v826 = vpop.f32.mrb[0].mxu0
    %v827 = vadd.f32 0.0, %v826
    %v828 = vpop.f32.mrb[0].mxu0
    %v829 = vadd.f32 0.0, %v828
    %830 = vmatprep.mubr.bf16.mxu0 0
    %831 = vmatmul.mubr.bf16.gmra.mrb[0].mxu0 %v474
    %v832 = vpop.f32.mrb[0].mxu0
    %v833 = vadd.f32 0.0, %v832
    %v834 = vpop.f32.mrb[0].mxu0
    %v835 = vadd.f32 0.0, %v834
    %v836 = vpop.f32.mrb[0].mxu0
    %v837 = vadd.f32 0.0, %v836
    %v838 = vpop.f32.mrb[0].mxu0
    %v839 = vadd.f32 0.0, %v838
    %840 = vmatprep.mubr.bf16.mxu0 0
    %841 = vmatmul.mubr.bf16.gmra.mrb[0].mxu0 %v477
    %v842 = vpop.f32.mrb[0].mxu0
    %v843 = vadd.f32 0.0, %v842
    %v844 = vpop.f32.mrb[0].mxu0
    %v845 = vadd.f32 0.0, %v844
    %v846 = vpop.f32.mrb[0].mxu0
    %v847 = vadd.f32 0.0, %v846
    %v848 = vpop.f32.mrb[0].mxu0
    %v849 = vadd.f32 0.0, %v848
    %850 = vmatprep.mubr.bf16.mxu0 0
    %851 = vmatmul.mubr.bf16.gmra.mrb[0].mxu0 %v480
    %v852 = vpop.f32.mrb[0].mxu0
    %v853 = vadd.f32 0.0, %v852
    %v854 = vpop.f32.mrb[0].mxu0
    %v855 = vadd.f32 0.0, %v854
    %v856 = vpop.f32.mrb[0].mxu0
    %v857 = vadd.f32 0.0, %v856
    %v858 = vpop.f32.mrb[0].mxu0
    %v859 = vadd.f32 0.0, %v858
    %860 = vmatprep.mubr.bf16.mxu0 0
    %861 = vmatmul.mubr.bf16.gmra.mrb[0].mxu0 %v483
    %v862 = vpop.f32.mrb[0].mxu0
    %v863 = vadd.f32 0.0, %v862
    %v864 = vpop.f32.mrb[0].mxu0
    %v865 = vadd.f32 0.0, %v864
    %v866 = vpop.f32.mrb[0].mxu0
    %v867 = vadd.f32 0.0, %v866
    %v868 = vpop.f32.mrb[0].mxu0
    %v869 = vadd.f32 0.0, %v868
    %870 = vdwg.mxu0
    %v871 = vadd.f32 %v148, %v520
    %v872 = vadd.f32 %v149, %v522
    %v873 = vadd.f32 %v150, %v713
    %v874 = vadd.f32 %v151, %v715
    %v875 = vadd.f32 %v152, %v524
    %v876 = vadd.f32 %v153, %v526
    %v877 = vadd.f32 %v154, %v717
    %v878 = vadd.f32 %v155, %v719
    %v879 = vadd.f32 %v156, %v530
    %v880 = vadd.f32 %v157, %v532
    %v881 = vadd.f32 %v158, %v723
    %v882 = vadd.f32 %v159, %v725
    %v883 = vadd.f32 %v160, %v534
    %v884 = vadd.f32 %v161, %v536
    %v885 = vadd.f32 %v162, %v727
    %v886 = vadd.f32 %v163, %v729
    %v887 = vadd.f32 %v164, %v540
    %v888 = vadd.f32 %v165, %v542
    %v889 = vadd.f32 %v166, %v733
    %v890 = vadd.f32 %v167, %v735
    %v891 = vadd.f32 %v168, %v544
    %v892 = vadd.f32 %v169, %v546
    %v893 = vadd.f32 %v170, %v737
    %v894 = vadd.f32 %v171, %v739
    %v895 = vadd.f32 %v172, %v550
    %v896 = vadd.f32 %v173, %v552
    %v897 = vadd.f32 %v174, %v743
    %v898 = vadd.f32 %v175, %v745
    %v899 = vadd.f32 %v176, %v554
    %v900 = vadd.f32 %v177, %v556
    %v901 = vadd.f32 %v178, %v747
    %v902 = vadd.f32 %v179, %v749
    %v903 = vadd.f32 %v180, %v560
    %v904 = vadd.f32 %v181, %v562
    %v905 = vadd.f32 %v182, %v753
    %v906 = vadd.f32 %v183, %v755
    %v907 = vadd.f32 %v184, %v564
    %v908 = vadd.f32 %v185, %v566
    %v909 = vadd.f32 %v186, %v757
    %v910 = vadd.f32 %v187, %v759
    %v911 = vadd.f32 %v188, %v570
    %v912 = vadd.f32 %v189, %v572
    %v913 = vadd.f32 %v190, %v763
    %v914 = vadd.f32 %v191, %v765
    %v915 = vadd.f32 %v192, %v574
    %v916 = vadd.f32 %v193, %v576
    %v917 = vadd.f32 %v194, %v767
    %v918 = vadd.f32 %v195, %v769
    %v919 = vadd.f32 %v196, %v580
    %v920 = vadd.f32 %v197, %v582
    %v921 = vadd.f32 %v198, %v773
    %v922 = vadd.f32 %v199, %v775
    %v923 = vadd.f32 %v200, %v584
    %v924 = vadd.f32 %v201, %v586
    %v925 = vadd.f32 %v202, %v777
    %v926 = vadd.f32 %v203, %v779
    %v927 = vadd.f32 %v204, %v590
    %v928 = vadd.f32 %v205, %v592
    %v929 = vadd.f32 %v206, %v783
    %v930 = vadd.f32 %v207, %v785
    %v931 = vadd.f32 %v208, %v594
    %v932 = vadd.f32 %v209, %v596
    %v933 = vadd.f32 %v210, %v787
    %v934 = vadd.f32 %v211, %v789
    %v935 = vadd.f32 %v212, %v600
    %v936 = vadd.f32 %v213, %v602
    %v937 = vadd.f32 %v214, %v793
    %v938 = vadd.f32 %v215, %v795
    %v939 = vadd.f32 %v216, %v604
    %v940 = vadd.f32 %v217, %v606
    %v941 = vadd.f32 %v218, %v797
    %v942 = vadd.f32 %v219, %v799
    %v943 = vadd.f32 %v220, %v610
    %v944 = vadd.f32 %v221, %v612
    %v945 = vadd.f32 %v222, %v803
    %v946 = vadd.f32 %v223, %v805
    %v947 = vadd.f32 %v224, %v614
    %v948 = vadd.f32 %v225, %v616
    %v949 = vadd.f32 %v226, %v807
    %v950 = vadd.f32 %v227, %v809
    %v951 = vadd.f32 %v228, %v620
    %v952 = vadd.f32 %v229, %v622
    %v953 = vadd.f32 %v230, %v813
    %v954 = vadd.f32 %v231, %v815
    %v955 = vadd.f32 %v232, %v624
    %v956 = vadd.f32 %v233, %v626
    %v957 = vadd.f32 %v234, %v817
    %v958 = vadd.f32 %v235, %v819
    %v959 = vadd.f32 %v236, %v630
    %v960 = vadd.f32 %v237, %v632
    %v961 = vadd.f32 %v238, %v823
    %v962 = vadd.f32 %v239, %v825
    %v963 = vadd.f32 %v240, %v634
    %v964 = vadd.f32 %v241, %v636
    %v965 = vadd.f32 %v242, %v827
    %v966 = vadd.f32 %v243, %v829
    %v967 = vadd.f32 %v244, %v640
    %v968 = vadd.f32 %v245, %v642
    %v969 = vadd.f32 %v246, %v833
    %v970 = vadd.f32 %v247, %v835
    %v971 = vadd.f32 %v248, %v644
    %v972 = vadd.f32 %v249, %v646
    %v973 = vadd.f32 %v250, %v837
    %v974 = vadd.f32 %v251, %v839
    %v975 = vadd.f32 %v252, %v650
    %v976 = vadd.f32 %v253, %v652
    %v977 = vadd.f32 %v254, %v843
    %v978 = vadd.f32 %v255, %v845
    %v979 = vadd.f32 %v256, %v654
    %v980 = vadd.f32 %v257, %v656
    %v981 = vadd.f32 %v258, %v847
    %v982 = vadd.f32 %v259, %v849
    %v983 = vadd.f32 %v260, %v660
    %v984 = vadd.f32 %v261, %v662
    %v985 = vadd.f32 %v262, %v853
    %v986 = vadd.f32 %v263, %v855
    %v987 = vadd.f32 %v264, %v664
    %v988 = vadd.f32 %v265, %v666
    %v989 = vadd.f32 %v266, %v857
    %v990 = vadd.f32 %v267, %v859
    %v991 = vadd.f32 %v268, %v670
    %v992 = vadd.f32 %v269, %v672
    %v993 = vadd.f32 %v270, %v863
    %v994 = vadd.f32 %v271, %v865
    %v995 = vadd.f32 %v272, %v674
    %v996 = vadd.f32 %v273, %v676
    %v997 = vadd.f32 %v274, %v867
    %v998 = vadd.f32 %v275, %v869
    %999 = vst [vmem:[#allocation2] sm:$0xff] %v871
    %1000 = vst [vmem:[#allocation2 + $0x8] sm:$0xff] %v872
    %1001 = vst [vmem:[#allocation2 + $0x10] sm:$0xff] %v873
    %1002 = vst [vmem:[#allocation2 + $0x18] sm:$0xff] %v874
    %1003 = vst [vmem:[#allocation2 + $0x20] sm:$0xff] %v875
    %1004 = vst [vmem:[#allocation2 + $0x28] sm:$0xff] %v876
    %1005 = vst [vmem:[#allocation2 + $0x30] sm:$0xff] %v877
    %1006 = vst [vmem:[#allocation2 + $0x38] sm:$0xff] %v878
    %1007 = vst [vmem:[#allocation2 + $0x40] sm:$0xff] %v879
    %1008 = vst [vmem:[#allocation2 + $0x48] sm:$0xff] %v880
    %1009 = vst [vmem:[#allocation2 + $0x50] sm:$0xff] %v881
    %1010 = vst [vmem:[#allocation2 + $0x58] sm:$0xff] %v882
    %1011 = vst [vmem:[#allocation2 + $0x60] sm:$0xff] %v883
    %1012 = vst [vmem:[#allocation2 + $0x68] sm:$0xff] %v884
    %1013 = vst [vmem:[#allocation2 + $0x70] sm:$0xff] %v885
    %1014 = vst [vmem:[#allocation2 + $0x78] sm:$0xff] %v886
    %1015 = vst [vmem:[#allocation2 + $0x80] sm:$0xff] %v887
    %1016 = vst [vmem:[#allocation2 + $0x88] sm:$0xff] %v888
    %1017 = vst [vmem:[#allocation2 + $0x90] sm:$0xff] %v889
    %1018 = vst [vmem:[#allocation2 + $0x98] sm:$0xff] %v890
    %1019 = vst [vmem:[#allocation2 + $0xa0] sm:$0xff] %v891
    %1020 = vst [vmem:[#allocation2 + $0xa8] sm:$0xff] %v892
    %1021 = vst [vmem:[#allocation2 + $0xb0] sm:$0xff] %v893
    %1022 = vst [vmem:[#allocation2 + $0xb8] sm:$0xff] %v894
    %1023 = vst [vmem:[#allocation2 + $0xc0] sm:$0xff] %v895
    %1024 = vst [vmem:[#allocation2 + $0xc8] sm:$0xff] %v896
    %1025 = vst [vmem:[#allocation2 + $0xd0] sm:$0xff] %v897
    %1026 = vst [vmem:[#allocation2 + $0xd8] sm:$0xff] %v898
    %1027 = vst [vmem:[#allocation2 + $0xe0] sm:$0xff] %v899
    %1028 = vst [vmem:[#allocation2 + $0xe8] sm:$0xff] %v900
    %1029 = vst [vmem:[#allocation2 + $0xf0] sm:$0xff] %v901
    %1030 = vst [vmem:[#allocation2 + $0xf8] sm:$0xff] %v902
    %1031 = vst [vmem:[#allocation2 + $0x100] sm:$0xff] %v903
    %1032 = vst [vmem:[#allocation2 + $0x108] sm:$0xff] %v904
    %1033 = vst [vmem:[#allocation2 + $0x110] sm:$0xff] %v905
    %1034 = vst [vmem:[#allocation2 + $0x118] sm:$0xff] %v906
    %1035 = vst [vmem:[#allocation2 + $0x120] sm:$0xff] %v907
    %1036 = vst [vmem:[#allocation2 + $0x128] sm:$0xff] %v908
    %1037 = vst [vmem:[#allocation2 + $0x130] sm:$0xff] %v909
    %1038 = vst [vmem:[#allocation2 + $0x138] sm:$0xff] %v910
    %1039 = vst [vmem:[#allocation2 + $0x140] sm:$0xff] %v911
    %1040 = vst [vmem:[#allocation2 + $0x148] sm:$0xff] %v912
    %1041 = vst [vmem:[#allocation2 + $0x150] sm:$0xff] %v913
    %1042 = vst [vmem:[#allocation2 + $0x158] sm:$0xff] %v914
    %1043 = vst [vmem:[#allocation2 + $0x160] sm:$0xff] %v915
    %1044 = vst [vmem:[#allocation2 + $0x168] sm:$0xff] %v916
    %1045 = vst [vmem:[#allocation2 + $0x170] sm:$0xff] %v917
    %1046 = vst [vmem:[#allocation2 + $0x178] sm:$0xff] %v918
    %1047 = vst [vmem:[#allocation2 + $0x180] sm:$0xff] %v919
    %1048 = vst [vmem:[#allocation2 + $0x188] sm:$0xff] %v920
    %1049 = vst [vmem:[#allocation2 + $0x190] sm:$0xff] %v921
    %1050 = vst [vmem:[#allocation2 + $0x198] sm:$0xff] %v922
    %1051 = vst [vmem:[#allocation2 + $0x1a0] sm:$0xff] %v923
    %1052 = vst [vmem:[#allocation2 + $0x1a8] sm:$0xff] %v924
    %1053 = vst [vmem:[#allocation2 + $0x1b0] sm:$0xff] %v925
    %1054 = vst [vmem:[#allocation2 + $0x1b8] sm:$0xff] %v926
    %1055 = vst [vmem:[#allocation2 + $0x1c0] sm:$0xff] %v927
    %1056 = vst [vmem:[#allocation2 + $0x1c8] sm:$0xff] %v928
    %1057 = vst [vmem:[#allocation2 + $0x1d0] sm:$0xff] %v929
    %1058 = vst [vmem:[#allocation2 + $0x1d8] sm:$0xff] %v930
    %1059 = vst [vmem:[#allocation2 + $0x1e0] sm:$0xff] %v931
    %1060 = vst [vmem:[#allocation2 + $0x1e8] sm:$0xff] %v932
    %1061 = vst [vmem:[#allocation2 + $0x1f0] sm:$0xff] %v933
    %1062 = vst [vmem:[#allocation2 + $0x1f8] sm:$0xff] %v934
    %1063 = vst [vmem:[#allocation2 + $0x200] sm:$0xff] %v935
    %1064 = vst [vmem:[#allocation2 + $0x208] sm:$0xff] %v936
    %1065 = vst [vmem:[#allocation2 + $0x210] sm:$0xff] %v937
    %1066 = vst [vmem:[#allocation2 + $0x218] sm:$0xff] %v938
    %1067 = vst [vmem:[#allocation2 + $0x220] sm:$0xff] %v939
    %1068 = vst [vmem:[#allocation2 + $0x228] sm:$0xff] %v940
    %1069 = vst [vmem:[#allocation2 + $0x230] sm:$0xff] %v941
    %1070 = vst [vmem:[#allocation2 + $0x238] sm:$0xff] %v942
    %1071 = vst [vmem:[#allocation2 + $0x240] sm:$0xff] %v943
    %1072 = vst [vmem:[#allocation2 + $0x248] sm:$0xff] %v944
    %1073 = vst [vmem:[#allocation2 + $0x250] sm:$0xff] %v945
    %1074 = vst [vmem:[#allocation2 + $0x258] sm:$0xff] %v946
    %1075 = vst [vmem:[#allocation2 + $0x260] sm:$0xff] %v947
    %1076 = vst [vmem:[#allocation2 + $0x268] sm:$0xff] %v948
    %1077 = vst [vmem:[#allocation2 + $0x270] sm:$0xff] %v949
    %1078 = vst [vmem:[#allocation2 + $0x278] sm:$0xff] %v950
    %1079 = vst [vmem:[#allocation2 + $0x280] sm:$0xff] %v951
    %1080 = vst [vmem:[#allocation2 + $0x288] sm:$0xff] %v952
    %1081 = vst [vmem:[#allocation2 + $0x290] sm:$0xff] %v953
    %1082 = vst [vmem:[#allocation2 + $0x298] sm:$0xff] %v954
    %1083 = vst [vmem:[#allocation2 + $0x2a0] sm:$0xff] %v955
    %1084 = vst [vmem:[#allocation2 + $0x2a8] sm:$0xff] %v956
    %1085 = vst [vmem:[#allocation2 + $0x2b0] sm:$0xff] %v957
    %1086 = vst [vmem:[#allocation2 + $0x2b8] sm:$0xff] %v958
    %1087 = vst [vmem:[#allocation2 + $0x2c0] sm:$0xff] %v959
    %1088 = vst [vmem:[#allocation2 + $0x2c8] sm:$0xff] %v960
    %1089 = vst [vmem:[#allocation2 + $0x2d0] sm:$0xff] %v961
    %1090 = vst [vmem:[#allocation2 + $0x2d8] sm:$0xff] %v962
    %1091 = vst [vmem:[#allocation2 + $0x2e0] sm:$0xff] %v963
    %1092 = vst [vmem:[#allocation2 + $0x2e8] sm:$0xff] %v964
    %1093 = vst [vmem:[#allocation2 + $0x2f0] sm:$0xff] %v965
    %1094 = vst [vmem:[#allocation2 + $0x2f8] sm:$0xff] %v966
    %1095 = vst [vmem:[#allocation2 + $0x300] sm:$0xff] %v967
    %1096 = vst [vmem:[#allocation2 + $0x308] sm:$0xff] %v968
    %1097 = vst [vmem:[#allocation2 + $0x310] sm:$0xff] %v969
    %1098 = vst [vmem:[#allocation2 + $0x318] sm:$0xff] %v970
    %1099 = vst [vmem:[#allocation2 + $0x320] sm:$0xff] %v971
    %1100 = vst [vmem:[#allocation2 + $0x328] sm:$0xff] %v972
    %1101 = vst [vmem:[#allocation2 + $0x330] sm:$0xff] %v973
    %1102 = vst [vmem:[#allocation2 + $0x338] sm:$0xff] %v974
    %1103 = vst [vmem:[#allocation2 + $0x340] sm:$0xff] %v975
    %1104 = vst [vmem:[#allocation2 + $0x348] sm:$0xff] %v976
    %1105 = vst [vmem:[#allocation2 + $0x350] sm:$0xff] %v977
    %1106 = vst [vmem:[#allocation2 + $0x358] sm:$0xff] %v978
    %1107 = vst [vmem:[#allocation2 + $0x360] sm:$0xff] %v979
    %1108 = vst [vmem:[#allocation2 + $0x368] sm:$0xff] %v980
    %1109 = vst [vmem:[#allocation2 + $0x370] sm:$0xff] %v981
    %1110 = vst [vmem:[#allocation2 + $0x378] sm:$0xff] %v982
    %1111 = vst [vmem:[#allocation2 + $0x380] sm:$0xff] %v983
    %1112 = vst [vmem:[#allocation2 + $0x388] sm:$0xff] %v984
    %1113 = vst [vmem:[#allocation2 + $0x390] sm:$0xff] %v985
    %1114 = vst [vmem:[#allocation2 + $0x398] sm:$0xff] %v986
    %1115 = vst [vmem:[#allocation2 + $0x3a0] sm:$0xff] %v987
    %1116 = vst [vmem:[#allocation2 + $0x3a8] sm:$0xff] %v988
    %1117 = vst [vmem:[#allocation2 + $0x3b0] sm:$0xff] %v989
    %1118 = vst [vmem:[#allocation2 + $0x3b8] sm:$0xff] %v990
    %1119 = vst [vmem:[#allocation2 + $0x3c0] sm:$0xff] %v991
    %1120 = vst [vmem:[#allocation2 + $0x3c8] sm:$0xff] %v992
    %1121 = vst [vmem:[#allocation2 + $0x3d0] sm:$0xff] %v993
    %1122 = vst [vmem:[#allocation2 + $0x3d8] sm:$0xff] %v994
    %1123 = vst [vmem:[#allocation2 + $0x3e0] sm:$0xff] %v995
    %1124 = vst [vmem:[#allocation2 + $0x3e8] sm:$0xff] %v996
    %1125 = vst [vmem:[#allocation2 + $0x3f0] sm:$0xff] %v997
    %1126 = vst [vmem:[#allocation2 + $0x3f8] sm:$0xff] %v998
    // Predicated region
    $region18: #{tpu_custom_call.1} parent=1 // pred_check
      %p1127 = pneg %p16
    $region19: #{tpu_custom_call.1} parent=1 // pred_check_branch
      %1129 = sbr.rel (%p1127) target = $region21
    $region20: #{tpu_custom_call.1} parent=1 // pred_region
      %v1130 = vld [vmem:[#allocation2] sm:$0xff]
      %v1131 = vld [vmem:[#allocation2 + $0x8] sm:$0xff]
      %v1132 = vld [vmem:[#allocation2 + $0x10] sm:$0xff]
      %v1133 = vld [vmem:[#allocation2 + $0x18] sm:$0xff]
      %v1134 = vld [vmem:[#allocation2 + $0x20] sm:$0xff]
      %v1135 = vld [vmem:[#allocation2 + $0x28] sm:$0xff]
      %v1136 = vld [vmem:[#allocation2 + $0x30] sm:$0xff]
      %v1137 = vld [vmem:[#allocation2 + $0x38] sm:$0xff]
      %v1138 = vld [vmem:[#allocation2 + $0x40] sm:$0xff]
      %v1139 = vld [vmem:[#allocation2 + $0x48] sm:$0xff]
      %v1140 = vld [vmem:[#allocation2 + $0x50] sm:$0xff]
      %v1141 = vld [vmem:[#allocation2 + $0x58] sm:$0xff]
      %v1142 = vld [vmem:[#allocation2 + $0x60] sm:$0xff]
      %v1143 = vld [vmem:[#allocation2 + $0x68] sm:$0xff]
      %v1144 = vld [vmem:[#allocation2 + $0x70] sm:$0xff]
      %v1145 = vld [vmem:[#allocation2 + $0x78] sm:$0xff]
      %v1146 = vld [vmem:[#allocation2 + $0x80] sm:$0xff]
      %v1147 = vld [vmem:[#allocation2 + $0x88] sm:$0xff]
      %v1148 = vld [vmem:[#allocation2 + $0x90] sm:$0xff]
      %v1149 = vld [vmem:[#allocation2 + $0x98] sm:$0xff]
      %v1150 = vld [vmem:[#allocation2 + $0xa0] sm:$0xff]
      %v1151 = vld [vmem:[#allocation2 + $0xa8] sm:$0xff]
      %v1152 = vld [vmem:[#allocation2 + $0xb0] sm:$0xff]
      %v1153 = vld [vmem:[#allocation2 + $0xb8] sm:$0xff]
      %v1154 = vld [vmem:[#allocation2 + $0xc0] sm:$0xff]
      %v1155 = vld [vmem:[#allocation2 + $0xc8] sm:$0xff]
      %v1156 = vld [vmem:[#allocation2 + $0xd0] sm:$0xff]
      %v1157 = vld [vmem:[#allocation2 + $0xd8] sm:$0xff]
      %v1158 = vld [vmem:[#allocation2 + $0xe0] sm:$0xff]
      %v1159 = vld [vmem:[#allocation2 + $0xe8] sm:$0xff]
      %v1160 = vld [vmem:[#allocation2 + $0xf0] sm:$0xff]
      %v1161 = vld [vmem:[#allocation2 + $0xf8] sm:$0xff]
      %v1162 = vld [vmem:[#allocation2 + $0x100] sm:$0xff]
      %v1163 = vld [vmem:[#allocation2 + $0x108] sm:$0xff]
      %v1164 = vld [vmem:[#allocation2 + $0x110] sm:$0xff]
      %v1165 = vld [vmem:[#allocation2 + $0x118] sm:$0xff]
      %v1166 = vld [vmem:[#allocation2 + $0x120] sm:$0xff]
      %v1167 = vld [vmem:[#allocation2 + $0x128] sm:$0xff]
      %v1168 = vld [vmem:[#allocation2 + $0x130] sm:$0xff]
      %v1169 = vld [vmem:[#allocation2 + $0x138] sm:$0xff]
      %v1170 = vld [vmem:[#allocation2 + $0x140] sm:$0xff]
      %v1171 = vld [vmem:[#allocation2 + $0x148] sm:$0xff]
      %v1172 = vld [vmem:[#allocation2 + $0x150] sm:$0xff]
      %v1173 = vld [vmem:[#allocation2 + $0x158] sm:$0xff]
      %v1174 = vld [vmem:[#allocation2 + $0x160] sm:$0xff]
      %v1175 = vld [vmem:[#allocation2 + $0x168] sm:$0xff]
      %v1176 = vld [vmem:[#allocation2 + $0x170] sm:$0xff]
      %v1177 = vld [vmem:[#allocation2 + $0x178] sm:$0xff]
      %v1178 = vld [vmem:[#allocation2 + $0x180] sm:$0xff]
      %v1179 = vld [vmem:[#allocation2 + $0x188] sm:$0xff]
      %v1180 = vld [vmem:[#allocation2 + $0x190] sm:$0xff]
      %v1181 = vld [vmem:[#allocation2 + $0x198] sm:$0xff]
      %v1182 = vld [vmem:[#allocation2 + $0x1a0] sm:$0xff]
      %v1183 = vld [vmem:[#allocation2 + $0x1a8] sm:$0xff]
      %v1184 = vld [vmem:[#allocation2 + $0x1b0] sm:$0xff]
      %v1185 = vld [vmem:[#allocation2 + $0x1b8] sm:$0xff]
      %v1186 = vld [vmem:[#allocation2 + $0x1c0] sm:$0xff]
      %v1187 = vld [vmem:[#allocation2 + $0x1c8] sm:$0xff]
      %v1188 = vld [vmem:[#allocation2 + $0x1d0] sm:$0xff]
      %v1189 = vld [vmem:[#allocation2 + $0x1d8] sm:$0xff]
      %v1190 = vld [vmem:[#allocation2 + $0x1e0] sm:$0xff]
      %v1191 = vld [vmem:[#allocation2 + $0x1e8] sm:$0xff]
      %v1192 = vld [vmem:[#allocation2 + $0x1f0] sm:$0xff]
      %v1193 = vld [vmem:[#allocation2 + $0x1f8] sm:$0xff]
      %v1194 = vld [vmem:[#allocation2 + $0x200] sm:$0xff]
      %v1195 = vld [vmem:[#allocation2 + $0x208] sm:$0xff]
      %v1196 = vld [vmem:[#allocation2 + $0x210] sm:$0xff]
      %v1197 = vld [vmem:[#allocation2 + $0x218] sm:$0xff]
      %v1198 = vld [vmem:[#allocation2 + $0x220] sm:$0xff]
      %v1199 = vld [vmem:[#allocation2 + $0x228] sm:$0xff]
      %v1200 = vld [vmem:[#allocation2 + $0x230] sm:$0xff]
      %v1201 = vld [vmem:[#allocation2 + $0x238] sm:$0xff]
      %v1202 = vld [vmem:[#allocation2 + $0x240] sm:$0xff]
      %v1203 = vld [vmem:[#allocation2 + $0x248] sm:$0xff]
      %v1204 = vld [vmem:[#allocation2 + $0x250] sm:$0xff]
      %v1205 = vld [vmem:[#allocation2 + $0x258] sm:$0xff]
      %v1206 = vld [vmem:[#allocation2 + $0x260] sm:$0xff]
      %v1207 = vld [vmem:[#allocation2 + $0x268] sm:$0xff]
      %v1208 = vld [vmem:[#allocation2 + $0x270] sm:$0xff]
      %v1209 = vld [vmem:[#allocation2 + $0x278] sm:$0xff]
      %v1210 = vld [vmem:[#allocation2 + $0x280] sm:$0xff]
      %v1211 = vld [vmem:[#allocation2 + $0x288] sm:$0xff]
      %v1212 = vld [vmem:[#allocation2 + $0x290] sm:$0xff]
      %v1213 = vld [vmem:[#allocation2 + $0x298] sm:$0xff]
      %v1214 = vld [vmem:[#allocation2 + $0x2a0] sm:$0xff]
      %v1215 = vld [vmem:[#allocation2 + $0x2a8] sm:$0xff]
      %v1216 = vld [vmem:[#allocation2 + $0x2b0] sm:$0xff]
      %v1217 = vld [vmem:[#allocation2 + $0x2b8] sm:$0xff]
      %v1218 = vld [vmem:[#allocation2 + $0x2c0] sm:$0xff]
      %v1219 = vld [vmem:[#allocation2 + $0x2c8] sm:$0xff]
      %v1220 = vld [vmem:[#allocation2 + $0x2d0] sm:$0xff]
      %v1221 = vld [vmem:[#allocation2 + $0x2d8] sm:$0xff]
      %v1222 = vld [vmem:[#allocation2 + $0x2e0] sm:$0xff]
      %v1223 = vld [vmem:[#allocation2 + $0x2e8] sm:$0xff]
      %v1224 = vld [vmem:[#allocation2 + $0x2f0] sm:$0xff]
      %v1225 = vld [vmem:[#allocation2 + $0x2f8] sm:$0xff]
      %v1226 = vld [vmem:[#allocation2 + $0x300] sm:$0xff]
      %v1227 = vld [vmem:[#allocation2 + $0x308] sm:$0xff]
      %v1228 = vld [vmem:[#allocation2 + $0x310] sm:$0xff]
      %v1229 = vld [vmem:[#allocation2 + $0x318] sm:$0xff]
      %v1230 = vld [vmem:[#allocation2 + $0x320] sm:$0xff]
      %v1231 = vld [vmem:[#allocation2 + $0x328] sm:$0xff]
      %v1232 = vld [vmem:[#allocation2 + $0x330] sm:$0xff]
      %v1233 = vld [vmem:[#allocation2 + $0x338] sm:$0xff]
      %v1234 = vld [vmem:[#allocation2 + $0x340] sm:$0xff]
      %v1235 = vld [vmem:[#allocation2 + $0x348] sm:$0xff]
      %v1236 = vld [vmem:[#allocation2 + $0x350] sm:$0xff]
      %v1237 = vld [vmem:[#allocation2 + $0x358] sm:$0xff]
      %v1238 = vld [vmem:[#allocation2 + $0x360] sm:$0xff]
      %v1239 = vld [vmem:[#allocation2 + $0x368] sm:$0xff]
      %v1240 = vld [vmem:[#allocation2 + $0x370] sm:$0xff]
      %v1241 = vld [vmem:[#allocation2 + $0x378] sm:$0xff]
      %v1242 = vld [vmem:[#allocation2 + $0x380] sm:$0xff]
      %v1243 = vld [vmem:[#allocation2 + $0x388] sm:$0xff]
      %v1244 = vld [vmem:[#allocation2 + $0x390] sm:$0xff]
      %v1245 = vld [vmem:[#allocation2 + $0x398] sm:$0xff]
      %v1246 = vld [vmem:[#allocation2 + $0x3a0] sm:$0xff]
      %v1247 = vld [vmem:[#allocation2 + $0x3a8] sm:$0xff]
      %v1248 = vld [vmem:[#allocation2 + $0x3b0] sm:$0xff]
      %v1249 = vld [vmem:[#allocation2 + $0x3b8] sm:$0xff]
      %v1250 = vld [vmem:[#allocation2 + $0x3c0] sm:$0xff]
      %v1251 = vld [vmem:[#allocation2 + $0x3c8] sm:$0xff]
      %v1252 = vld [vmem:[#allocation2 + $0x3d0] sm:$0xff]
      %v1253 = vld [vmem:[#allocation2 + $0x3d8] sm:$0xff]
      %v1254 = vld [vmem:[#allocation2 + $0x3e0] sm:$0xff]
      %v1255 = vld [vmem:[#allocation2 + $0x3e8] sm:$0xff]
      %v1256 = vld [vmem:[#allocation2 + $0x3f0] sm:$0xff]
      %v1257 = vld [vmem:[#allocation2 + $0x3f8] sm:$0xff]
      %v1258 = vld [vmem:[%s2] sm:$0xf]
      %v1260 = vlaneseq
      %v1261 = vshrl.u32 %v1260, 7
      %v1262 = vsub.s32 0, %v1261
      %v1263 = vrot.slane %v1258, %v1262
      %v1264 = vlaneseq
      %v1265 = vshrl.u32 %v1264, 7
      %v1266 = vsub.s32 1, %v1265
      %v1267 = vrot.slane %v1258, %v1266
      %v1268 = vlaneseq
      %v1269 = vshrl.u32 %v1268, 7
      %v1270 = vsub.s32 2, %v1269
      %v1271 = vrot.slane %v1258, %v1270
      %v1272 = vlaneseq
      %v1273 = vshrl.u32 %v1272, 7
      %v1274 = vsub.s32 3, %v1273
      %v1275 = vrot.slane %v1258, %v1274
      %v1280 = vadd.f32 %v1130, %v1263
      %v1281 = vadd.f32 %v1131, %v1267
      %v1282 = vadd.f32 %v1132, %v1271
      %v1283 = vadd.f32 %v1133, %v1275
      %v1284 = vadd.f32 %v1134, %v1263
      %v1285 = vadd.f32 %v1135, %v1267
      %v1286 = vadd.f32 %v1136, %v1271
      %v1287 = vadd.f32 %v1137, %v1275
      %v1288 = vadd.f32 %v1138, %v1263
      %v1289 = vadd.f32 %v1139, %v1267
      %v1290 = vadd.f32 %v1140, %v1271
      %v1291 = vadd.f32 %v1141, %v1275
      %v1292 = vadd.f32 %v1142, %v1263
      %v1293 = vadd.f32 %v1143, %v1267
      %v1294 = vadd.f32 %v1144, %v1271
      %v1295 = vadd.f32 %v1145, %v1275
      %v1296 = vadd.f32 %v1146, %v1263
      %v1297 = vadd.f32 %v1147, %v1267
      %v1298 = vadd.f32 %v1148, %v1271
      %v1299 = vadd.f32 %v1149, %v1275
      %v1300 = vadd.f32 %v1150, %v1263
      %v1301 = vadd.f32 %v1151, %v1267
      %v1302 = vadd.f32 %v1152, %v1271
      %v1303 = vadd.f32 %v1153, %v1275
      %v1304 = vadd.f32 %v1154, %v1263
      %v1305 = vadd.f32 %v1155, %v1267
      %v1306 = vadd.f32 %v1156, %v1271
      %v1307 = vadd.f32 %v1157, %v1275
      %v1308 = vadd.f32 %v1158, %v1263
      %v1309 = vadd.f32 %v1159, %v1267
      %v1310 = vadd.f32 %v1160, %v1271
      %v1311 = vadd.f32 %v1161, %v1275
      %v1312 = vadd.f32 %v1162, %v1263
      %v1313 = vadd.f32 %v1163, %v1267
      %v1314 = vadd.f32 %v1164, %v1271
      %v1315 = vadd.f32 %v1165, %v1275
      %v1316 = vadd.f32 %v1166, %v1263
      %v1317 = vadd.f32 %v1167, %v1267
      %v1318 = vadd.f32 %v1168, %v1271
      %v1319 = vadd.f32 %v1169, %v1275
      %v1320 = vadd.f32 %v1170, %v1263
      %v1321 = vadd.f32 %v1171, %v1267
      %v1322 = vadd.f32 %v1172, %v1271
      %v1323 = vadd.f32 %v1173, %v1275
      %v1324 = vadd.f32 %v1174, %v1263
      %v1325 = vadd.f32 %v1175, %v1267
      %v1326 = vadd.f32 %v1176, %v1271
      %v1327 = vadd.f32 %v1177, %v1275
      %v1328 = vadd.f32 %v1178, %v1263
      %v1329 = vadd.f32 %v1179, %v1267
      %v1330 = vadd.f32 %v1180, %v1271
      %v1331 = vadd.f32 %v1181, %v1275
      %v1332 = vadd.f32 %v1182, %v1263
      %v1333 = vadd.f32 %v1183, %v1267
      %v1334 = vadd.f32 %v1184, %v1271
      %v1335 = vadd.f32 %v1185, %v1275
      %v1336 = vadd.f32 %v1186, %v1263
      %v1337 = vadd.f32 %v1187, %v1267
      %v1338 = vadd.f32 %v1188, %v1271
      %v1339 = vadd.f32 %v1189, %v1275
      %v1340 = vadd.f32 %v1190, %v1263
      %v1341 = vadd.f32 %v1191, %v1267
      %v1342 = vadd.f32 %v1192, %v1271
      %v1343 = vadd.f32 %v1193, %v1275
      %v1344 = vadd.f32 %v1194, %v1263
      %v1345 = vadd.f32 %v1195, %v1267
      %v1346 = vadd.f32 %v1196, %v1271
      %v1347 = vadd.f32 %v1197, %v1275
      %v1348 = vadd.f32 %v1198, %v1263
      %v1349 = vadd.f32 %v1199, %v1267
      %v1350 = vadd.f32 %v1200, %v1271
      %v1351 = vadd.f32 %v1201, %v1275
      %v1352 = vadd.f32 %v1202, %v1263
      %v1353 = vadd.f32 %v1203, %v1267
      %v1354 = vadd.f32 %v1204, %v1271
      %v1355 = vadd.f32 %v1205, %v1275
      %v1356 = vadd.f32 %v1206, %v1263
      %v1357 = vadd.f32 %v1207, %v1267
      %v1358 = vadd.f32 %v1208, %v1271
      %v1359 = vadd.f32 %v1209, %v1275
      %v1360 = vadd.f32 %v1210, %v1263
      %v1361 = vadd.f32 %v1211, %v1267
      %v1362 = vadd.f32 %v1212, %v1271
      %v1363 = vadd.f32 %v1213, %v1275
      %v1364 = vadd.f32 %v1214, %v1263
      %v1365 = vadd.f32 %v1215, %v1267
      %v1366 = vadd.f32 %v1216, %v1271
      %v1367 = vadd.f32 %v1217, %v1275
      %v1368 = vadd.f32 %v1218, %v1263
      %v1369 = vadd.f32 %v1219, %v1267
      %v1370 = vadd.f32 %v1220, %v1271
      %v1371 = vadd.f32 %v1221, %v1275
      %v1372 = vadd.f32 %v1222, %v1263
      %v1373 = vadd.f32 %v1223, %v1267
      %v1374 = vadd.f32 %v1224, %v1271
      %v1375 = vadd.f32 %v1225, %v1275
      %v1376 = vadd.f32 %v1226, %v1263
      %v1377 = vadd.f32 %v1227, %v1267
      %v1378 = vadd.f32 %v1228, %v1271
      %v1379 = vadd.f32 %v1229, %v1275
      %v1380 = vadd.f32 %v1230, %v1263
      %v1381 = vadd.f32 %v1231, %v1267
      %v1382 = vadd.f32 %v1232, %v1271
      %v1383 = vadd.f32 %v1233, %v1275
      %v1384 = vadd.f32 %v1234, %v1263
      %v1385 = vadd.f32 %v1235, %v1267
      %v1386 = vadd.f32 %v1236, %v1271
      %v1387 = vadd.f32 %v1237, %v1275
      %v1388 = vadd.f32 %v1238, %v1263
      %v1389 = vadd.f32 %v1239, %v1267
      %v1390 = vadd.f32 %v1240, %v1271
      %v1391 = vadd.f32 %v1241, %v1275
      %v1392 = vadd.f32 %v1242, %v1263
      %v1393 = vadd.f32 %v1243, %v1267
      %v1394 = vadd.f32 %v1244, %v1271
      %v1395 = vadd.f32 %v1245, %v1275
      %v1396 = vadd.f32 %v1246, %v1263
      %v1397 = vadd.f32 %v1247, %v1267
      %v1398 = vadd.f32 %v1248, %v1271
      %v1399 = vadd.f32 %v1249, %v1275
      %v1400 = vadd.f32 %v1250, %v1263
      %v1401 = vadd.f32 %v1251, %v1267
      %v1402 = vadd.f32 %v1252, %v1271
      %v1403 = vadd.f32 %v1253, %v1275
      %v1404 = vadd.f32 %v1254, %v1263
      %v1405 = vadd.f32 %v1255, %v1267
      %v1406 = vadd.f32 %v1256, %v1271
      %v1407 = vadd.f32 %v1257, %v1275
      %v1408 = vpack.c.bf16 %v1284, %v1280
      %v1409 = vpack.c.bf16 %v1285, %v1281
      %v1410 = vpack.c.bf16 %v1286, %v1282
      %v1411 = vpack.c.bf16 %v1287, %v1283
      %v1412 = vpack.c.bf16 %v1292, %v1288
      %v1413 = vpack.c.bf16 %v1293, %v1289
      %v1414 = vpack.c.bf16 %v1294, %v1290
      %v1415 = vpack.c.bf16 %v1295, %v1291
      %v1416 = vpack.c.bf16 %v1300, %v1296
      %v1417 = vpack.c.bf16 %v1301, %v1297
      %v1418 = vpack.c.bf16 %v1302, %v1298
      %v1419 = vpack.c.bf16 %v1303, %v1299
      %v1420 = vpack.c.bf16 %v1308, %v1304
      %v1421 = vpack.c.bf16 %v1309, %v1305
      %v1422 = vpack.c.bf16 %v1310, %v1306
      %v1423 = vpack.c.bf16 %v1311, %v1307
      %v1424 = vpack.c.bf16 %v1316, %v1312
      %v1425 = vpack.c.bf16 %v1317, %v1313
      %v1426 = vpack.c.bf16 %v1318, %v1314
      %v1427 = vpack.c.bf16 %v1319, %v1315
      %v1428 = vpack.c.bf16 %v1324, %v1320
      %v1429 = vpack.c.bf16 %v1325, %v1321
      %v1430 = vpack.c.bf16 %v1326, %v1322
      %v1431 = vpack.c.bf16 %v1327, %v1323
      %v1432 = vpack.c.bf16 %v1332, %v1328
      %v1433 = vpack.c.bf16 %v1333, %v1329
      %v1434 = vpack.c.bf16 %v1334, %v1330
      %v1435 = vpack.c.bf16 %v1335, %v1331
      %v1436 = vpack.c.bf16 %v1340, %v1336
      %v1437 = vpack.c.bf16 %v1341, %v1337
      %v1438 = vpack.c.bf16 %v1342, %v1338
      %v1439 = vpack.c.bf16 %v1343, %v1339
      %v1440 = vpack.c.bf16 %v1348, %v1344
      %v1441 = vpack.c.bf16 %v1349, %v1345
      %v1442 = vpack.c.bf16 %v1350, %v1346
      %v1443 = vpack.c.bf16 %v1351, %v1347
      %v1444 = vpack.c.bf16 %v1356, %v1352
      %v1445 = vpack.c.bf16 %v1357, %v1353
      %v1446 = vpack.c.bf16 %v1358, %v1354
      %v1447 = vpack.c.bf16 %v1359, %v1355
      %v1448 = vpack.c.bf16 %v1364, %v1360
      %v1449 = vpack.c.bf16 %v1365, %v1361
      %v1450 = vpack.c.bf16 %v1366, %v1362
      %v1451 = vpack.c.bf16 %v1367, %v1363
      %v1452 = vpack.c.bf16 %v1372, %v1368
      %v1453 = vpack.c.bf16 %v1373, %v1369
      %v1454 = vpack.c.bf16 %v1374, %v1370
      %v1455 = vpack.c.bf16 %v1375, %v1371
      %v1456 = vpack.c.bf16 %v1380, %v1376
      %v1457 = vpack.c.bf16 %v1381, %v1377
      %v1458 = vpack.c.bf16 %v1382, %v1378
      %v1459 = vpack.c.bf16 %v1383, %v1379
      %v1460 = vpack.c.bf16 %v1388, %v1384
      %v1461 = vpack.c.bf16 %v1389, %v1385
      %v1462 = vpack.c.bf16 %v1390, %v1386
      %v1463 = vpack.c.bf16 %v1391, %v1387
      %v1464 = vpack.c.bf16 %v1396, %v1392
      %v1465 = vpack.c.bf16 %v1397, %v1393
      %v1466 = vpack.c.bf16 %v1398, %v1394
      %v1467 = vpack.c.bf16 %v1399, %v1395
      %v1468 = vpack.c.bf16 %v1404, %v1400
      %v1469 = vpack.c.bf16 %v1405, %v1401
      %v1470 = vpack.c.bf16 %v1406, %v1402
      %v1471 = vpack.c.bf16 %v1407, %v1403
      %v1536 = vunpack.c.l.b16 %v1408
      %v1537 = vunpack.c.l.b16 %v1409
      %v1538 = vunpack.c.l.b16 %v1410
      %v1539 = vunpack.c.l.b16 %v1411
      %v1540 = vunpack.c.h.b16 %v1408
      %v1541 = vunpack.c.h.b16 %v1409
      %v1542 = vunpack.c.h.b16 %v1410
      %v1543 = vunpack.c.h.b16 %v1411
      %v1544 = vunpack.c.l.b16 %v1412
      %v1545 = vunpack.c.l.b16 %v1413
      %v1546 = vunpack.c.l.b16 %v1414
      %v1547 = vunpack.c.l.b16 %v1415
      %v1548 = vunpack.c.h.b16 %v1412
      %v1549 = vunpack.c.h.b16 %v1413
      %v1550 = vunpack.c.h.b16 %v1414
      %v1551 = vunpack.c.h.b16 %v1415
      %v1552 = vunpack.c.l.b16 %v1416
      %v1553 = vunpack.c.l.b16 %v1417
      %v1554 = vunpack.c.l.b16 %v1418
      %v1555 = vunpack.c.l.b16 %v1419
      %v1556 = vunpack.c.h.b16 %v1416
      %v1557 = vunpack.c.h.b16 %v1417
      %v1558 = vunpack.c.h.b16 %v1418
      %v1559 = vunpack.c.h.b16 %v1419
      %v1560 = vunpack.c.l.b16 %v1420
      %v1561 = vunpack.c.l.b16 %v1421
      %v1562 = vunpack.c.l.b16 %v1422
      %v1563 = vunpack.c.l.b16 %v1423
      %v1564 = vunpack.c.h.b16 %v1420
      %v1565 = vunpack.c.h.b16 %v1421
      %v1566 = vunpack.c.h.b16 %v1422
      %v1567 = vunpack.c.h.b16 %v1423
      %v1568 = vunpack.c.l.b16 %v1424
      %v1569 = vunpack.c.l.b16 %v1425
      %v1570 = vunpack.c.l.b16 %v1426
      %v1571 = vunpack.c.l.b16 %v1427
      %v1572 = vunpack.c.h.b16 %v1424
      %v1573 = vunpack.c.h.b16 %v1425
      %v1574 = vunpack.c.h.b16 %v1426
      %v1575 = vunpack.c.h.b16 %v1427
      %v1576 = vunpack.c.l.b16 %v1428
      %v1577 = vunpack.c.l.b16 %v1429
      %v1578 = vunpack.c.l.b16 %v1430
      %v1579 = vunpack.c.l.b16 %v1431
      %v1580 = vunpack.c.h.b16 %v1428
      %v1581 = vunpack.c.h.b16 %v1429
      %v1582 = vunpack.c.h.b16 %v1430
      %v1583 = vunpack.c.h.b16 %v1431
      %v1584 = vunpack.c.l.b16 %v1432
      %v1585 = vunpack.c.l.b16 %v1433
      %v1586 = vunpack.c.l.b16 %v1434
      %v1587 = vunpack.c.l.b16 %v1435
      %v1588 = vunpack.c.h.b16 %v1432
      %v1589 = vunpack.c.h.b16 %v1433
      %v1590 = vunpack.c.h.b16 %v1434
      %v1591 = vunpack.c.h.b16 %v1435
      %v1592 = vunpack.c.l.b16 %v1436
      %v1593 = vunpack.c.l.b16 %v1437
      %v1594 = vunpack.c.l.b16 %v1438
      %v1595 = vunpack.c.l.b16 %v1439
      %v1596 = vunpack.c.h.b16 %v1436
      %v1597 = vunpack.c.h.b16 %v1437
      %v1598 = vunpack.c.h.b16 %v1438
      %v1599 = vunpack.c.h.b16 %v1439
      %v1600 = vunpack.c.l.b16 %v1440
      %v1601 = vunpack.c.l.b16 %v1441
      %v1602 = vunpack.c.l.b16 %v1442
      %v1603 = vunpack.c.l.b16 %v1443
      %v1604 = vunpack.c.h.b16 %v1440
      %v1605 = vunpack.c.h.b16 %v1441
      %v1606 = vunpack.c.h.b16 %v1442
      %v1607 = vunpack.c.h.b16 %v1443
      %v1608 = vunpack.c.l.b16 %v1444
      %v1609 = vunpack.c.l.b16 %v1445
      %v1610 = vunpack.c.l.b16 %v1446
      %v1611 = vunpack.c.l.b16 %v1447
      %v1612 = vunpack.c.h.b16 %v1444
      %v1613 = vunpack.c.h.b16 %v1445
      %v1614 = vunpack.c.h.b16 %v1446
      %v1615 = vunpack.c.h.b16 %v1447
      %v1616 = vunpack.c.l.b16 %v1448
      %v1617 = vunpack.c.l.b16 %v1449
      %v1618 = vunpack.c.l.b16 %v1450
      %v1619 = vunpack.c.l.b16 %v1451
      %v1620 = vunpack.c.h.b16 %v1448
      %v1621 = vunpack.c.h.b16 %v1449
      %v1622 = vunpack.c.h.b16 %v1450
      %v1623 = vunpack.c.h.b16 %v1451
      %v1624 = vunpack.c.l.b16 %v1452
      %v1625 = vunpack.c.l.b16 %v1453
      %v1626 = vunpack.c.l.b16 %v1454
      %v1627 = vunpack.c.l.b16 %v1455
      %v1628 = vunpack.c.h.b16 %v1452
      %v1629 = vunpack.c.h.b16 %v1453
      %v1630 = vunpack.c.h.b16 %v1454
      %v1631 = vunpack.c.h.b16 %v1455
      %v1632 = vunpack.c.l.b16 %v1456
      %v1633 = vunpack.c.l.b16 %v1457
      %v1634 = vunpack.c.l.b16 %v1458
      %v1635 = vunpack.c.l.b16 %v1459
      %v1636 = vunpack.c.h.b16 %v1456
      %v1637 = vunpack.c.h.b16 %v1457
      %v1638 = vunpack.c.h.b16 %v1458
      %v1639 = vunpack.c.h.b16 %v1459
      %v1640 = vunpack.c.l.b16 %v1460
      %v1641 = vunpack.c.l.b16 %v1461
      %v1642 = vunpack.c.l.b16 %v1462
      %v1643 = vunpack.c.l.b16 %v1463
      %v1644 = vunpack.c.h.b16 %v1460
      %v1645 = vunpack.c.h.b16 %v1461
      %v1646 = vunpack.c.h.b16 %v1462
      %v1647 = vunpack.c.h.b16 %v1463
      %v1648 = vunpack.c.l.b16 %v1464
      %v1649 = vunpack.c.l.b16 %v1465
      %v1650 = vunpack.c.l.b16 %v1466
      %v1651 = vunpack.c.l.b16 %v1467
      %v1652 = vunpack.c.h.b16 %v1464
      %v1653 = vunpack.c.h.b16 %v1465
      %v1654 = vunpack.c.h.b16 %v1466
      %v1655 = vunpack.c.h.b16 %v1467
      %v1656 = vunpack.c.l.b16 %v1468
      %v1657 = vunpack.c.l.b16 %v1469
      %v1658 = vunpack.c.l.b16 %v1470
      %v1659 = vunpack.c.l.b16 %v1471
      %v1660 = vunpack.c.h.b16 %v1468
      %v1661 = vunpack.c.h.b16 %v1469
      %v1662 = vunpack.c.h.b16 %v1470
      %v1663 = vunpack.c.h.b16 %v1471
      %v1664 = vpack.c.b16 %v1537, %v1536
      %v1665 = vpack.c.b16 %v1539, %v1538
      %v1666 = vpack.c.b16 %v1541, %v1540
      %v1667 = vpack.c.b16 %v1543, %v1542
      %v1668 = vpack.c.b16 %v1545, %v1544
      %v1669 = vpack.c.b16 %v1547, %v1546
      %v1670 = vpack.c.b16 %v1549, %v1548
      %v1671 = vpack.c.b16 %v1551, %v1550
      %v1672 = vpack.c.b16 %v1553, %v1552
      %v1673 = vpack.c.b16 %v1555, %v1554
      %v1674 = vpack.c.b16 %v1557, %v1556
      %v1675 = vpack.c.b16 %v1559, %v1558
      %v1676 = vpack.c.b16 %v1561, %v1560
      %v1677 = vpack.c.b16 %v1563, %v1562
      %v1678 = vpack.c.b16 %v1565, %v1564
      %v1679 = vpack.c.b16 %v1567, %v1566
      %v1680 = vpack.c.b16 %v1569, %v1568
      %v1681 = vpack.c.b16 %v1571, %v1570
      %v1682 = vpack.c.b16 %v1573, %v1572
      %v1683 = vpack.c.b16 %v1575, %v1574
      %v1684 = vpack.c.b16 %v1577, %v1576
      %v1685 = vpack.c.b16 %v1579, %v1578
      %v1686 = vpack.c.b16 %v1581, %v1580
      %v1687 = vpack.c.b16 %v1583, %v1582
      %v1688 = vpack.c.b16 %v1585, %v1584
      %v1689 = vpack.c.b16 %v1587, %v1586
      %v1690 = vpack.c.b16 %v1589, %v1588
      %v1691 = vpack.c.b16 %v1591, %v1590
      %v1692 = vpack.c.b16 %v1593, %v1592
      %v1693 = vpack.c.b16 %v1595, %v1594
      %v1694 = vpack.c.b16 %v1597, %v1596
      %v1695 = vpack.c.b16 %v1599, %v1598
      %v1696 = vpack.c.b16 %v1601, %v1600
      %v1697 = vpack.c.b16 %v1603, %v1602
      %v1698 = vpack.c.b16 %v1605, %v1604
      %v1699 = vpack.c.b16 %v1607, %v1606
      %v1700 = vpack.c.b16 %v1609, %v1608
      %v1701 = vpack.c.b16 %v1611, %v1610
      %v1702 = vpack.c.b16 %v1613, %v1612
      %v1703 = vpack.c.b16 %v1615, %v1614
      %v1704 = vpack.c.b16 %v1617, %v1616
      %v1705 = vpack.c.b16 %v1619, %v1618
      %v1706 = vpack.c.b16 %v1621, %v1620
      %v1707 = vpack.c.b16 %v1623, %v1622
      %v1708 = vpack.c.b16 %v1625, %v1624
      %v1709 = vpack.c.b16 %v1627, %v1626
      %v1710 = vpack.c.b16 %v1629, %v1628
      %v1711 = vpack.c.b16 %v1631, %v1630
      %v1712 = vpack.c.b16 %v1633, %v1632
      %v1713 = vpack.c.b16 %v1635, %v1634
      %v1714 = vpack.c.b16 %v1637, %v1636
      %v1715 = vpack.c.b16 %v1639, %v1638
      %v1716 = vpack.c.b16 %v1641, %v1640
      %v1717 = vpack.c.b16 %v1643, %v1642
      %v1718 = vpack.c.b16 %v1645, %v1644
      %v1719 = vpack.c.b16 %v1647, %v1646
      %v1720 = vpack.c.b16 %v1649, %v1648
      %v1721 = vpack.c.b16 %v1651, %v1650
      %v1722 = vpack.c.b16 %v1653, %v1652
      %v1723 = vpack.c.b16 %v1655, %v1654
      %v1724 = vpack.c.b16 %v1657, %v1656
      %v1725 = vpack.c.b16 %v1659, %v1658
      %v1726 = vpack.c.b16 %v1661, %v1660
      %v1727 = vpack.c.b16 %v1663, %v1662
      %1792 = vst [vmem:[#allocation3] sm:$0xff] %v1664
      %1793 = vst [vmem:[#allocation3 + $0x8] sm:$0xff] %v1665
      %1794 = vst [vmem:[#allocation3 + $0x10] sm:$0xff] %v1666
      %1795 = vst [vmem:[#allocation3 + $0x18] sm:$0xff] %v1667
      %1796 = vst [vmem:[#allocation3 + $0x20] sm:$0xff] %v1668
      %1797 = vst [vmem:[#allocation3 + $0x28] sm:$0xff] %v1669
      %1798 = vst [vmem:[#allocation3 + $0x30] sm:$0xff] %v1670
      %1799 = vst [vmem:[#allocation3 + $0x38] sm:$0xff] %v1671
      %1800 = vst [vmem:[#allocation3 + $0x40] sm:$0xff] %v1672
      %1801 = vst [vmem:[#allocation3 + $0x48] sm:$0xff] %v1673
      %1802 = vst [vmem:[#allocation3 + $0x50] sm:$0xff] %v1674
      %1803 = vst [vmem:[#allocation3 + $0x58] sm:$0xff] %v1675
      %1804 = vst [vmem:[#allocation3 + $0x60] sm:$0xff] %v1676
      %1805 = vst [vmem:[#allocation3 + $0x68] sm:$0xff] %v1677
      %1806 = vst [vmem:[#allocation3 + $0x70] sm:$0xff] %v1678
      %1807 = vst [vmem:[#allocation3 + $0x78] sm:$0xff] %v1679
      %1808 = vst [vmem:[#allocation3 + $0x80] sm:$0xff] %v1680
      %1809 = vst [vmem:[#allocation3 + $0x88] sm:$0xff] %v1681
      %1810 = vst [vmem:[#allocation3 + $0x90] sm:$0xff] %v1682
      %1811 = vst [vmem:[#allocation3 + $0x98] sm:$0xff] %v1683
      %1812 = vst [vmem:[#allocation3 + $0xa0] sm:$0xff] %v1684
      %1813 = vst [vmem:[#allocation3 + $0xa8] sm:$0xff] %v1685
      %1814 = vst [vmem:[#allocation3 + $0xb0] sm:$0xff] %v1686
      %1815 = vst [vmem:[#allocation3 + $0xb8] sm:$0xff] %v1687
      %1816 = vst [vmem:[#allocation3 + $0xc0] sm:$0xff] %v1688
      %1817 = vst [vmem:[#allocation3 + $0xc8] sm:$0xff] %v1689
      %1818 = vst [vmem:[#allocation3 + $0xd0] sm:$0xff] %v1690
      %1819 = vst [vmem:[#allocation3 + $0xd8] sm:$0xff] %v1691
      %1820 = vst [vmem:[#allocation3 + $0xe0] sm:$0xff] %v1692
      %1821 = vst [vmem:[#allocation3 + $0xe8] sm:$0xff] %v1693
      %1822 = vst [vmem:[#allocation3 + $0xf0] sm:$0xff] %v1694
      %1823 = vst [vmem:[#allocation3 + $0xf8] sm:$0xff] %v1695
      %1824 = vst [vmem:[#allocation3 + $0x100] sm:$0xff] %v1696
      %1825 = vst [vmem:[#allocation3 + $0x108] sm:$0xff] %v1697
      %1826 = vst [vmem:[#allocation3 + $0x110] sm:$0xff] %v1698
      %1827 = vst [vmem:[#allocation3 + $0x118] sm:$0xff] %v1699
      %1828 = vst [vmem:[#allocation3 + $0x120] sm:$0xff] %v1700
      %1829 = vst [vmem:[#allocation3 + $0x128] sm:$0xff] %v1701
      %1830 = vst [vmem:[#allocation3 + $0x130] sm:$0xff] %v1702
      %1831 = vst [vmem:[#allocation3 + $0x138] sm:$0xff] %v1703
      %1832 = vst [vmem:[#allocation3 + $0x140] sm:$0xff] %v1704
      %1833 = vst [vmem:[#allocation3 + $0x148] sm:$0xff] %v1705
      %1834 = vst [vmem:[#allocation3 + $0x150] sm:$0xff] %v1706
      %1835 = vst [vmem:[#allocation3 + $0x158] sm:$0xff] %v1707
      %1836 = vst [vmem:[#allocation3 + $0x160] sm:$0xff] %v1708
      %1837 = vst [vmem:[#allocation3 + $0x168] sm:$0xff] %v1709
      %1838 = vst [vmem:[#allocation3 + $0x170] sm:$0xff] %v1710
      %1839 = vst [vmem:[#allocation3 + $0x178] sm:$0xff] %v1711
      %1840 = vst [vmem:[#allocation3 + $0x180] sm:$0xff] %v1712
      %1841 = vst [vmem:[#allocation3 + $0x188] sm:$0xff] %v1713
      %1842 = vst [vmem:[#allocation3 + $0x190] sm:$0xff] %v1714
      %1843 = vst [vmem:[#allocation3 + $0x198] sm:$0xff] %v1715
      %1844 = vst [vmem:[#allocation3 + $0x1a0] sm:$0xff] %v1716
      %1845 = vst [vmem:[#allocation3 + $0x1a8] sm:$0xff] %v1717
      %1846 = vst [vmem:[#allocation3 + $0x1b0] sm:$0xff] %v1718
      %1847 = vst [vmem:[#allocation3 + $0x1b8] sm:$0xff] %v1719
      %1848 = vst [vmem:[#allocation3 + $0x1c0] sm:$0xff] %v1720
      %1849 = vst [vmem:[#allocation3 + $0x1c8] sm:$0xff] %v1721
      %1850 = vst [vmem:[#allocation3 + $0x1d0] sm:$0xff] %v1722
      %1851 = vst [vmem:[#allocation3 + $0x1d8] sm:$0xff] %v1723
      %1852 = vst [vmem:[#allocation3 + $0x1e0] sm:$0xff] %v1724
      %1853 = vst [vmem:[#allocation3 + $0x1e8] sm:$0xff] %v1725
      %1854 = vst [vmem:[#allocation3 + $0x1f0] sm:$0xff] %v1726
      %1855 = vst [vmem:[#allocation3 + $0x1f8] sm:$0xff] %v1727
    $region21: #{tpu_custom_call.1} parent=1 // pred_fallthru
      _
    // Predicated region
    $region22: #{tpu_custom_call.1} parent=1 // pred_check
      _
    $region23: #{tpu_custom_call.1} parent=1 // pred_check_branch
      %1857 = sbr.rel (0) target = $region25
    $region24: #{tpu_custom_call.1} parent=1 // pred_region
      %s1859 = ssub.s32 8192, 8192
      %1860 = vsyncadd [#allocation4], %s1859
      %s1861 = sshll.u32 [#allocation3], 4
      %s1862 = int_to_ptr.vmem [resolvable:$true] %s1861
      %1867 = dma.vmem_to_hbm [thread:$0]  %s1862, 8192, %s3, [#allocation4], 256, 256, 16
    $region25: #{tpu_custom_call.1} parent=1 // pred_fallthru
      _
    // Predicated region
    $region26: #{tpu_custom_call.1} parent=1 // pred_check
      _
    $region27: #{tpu_custom_call.1} parent=1 // pred_check_branch
      %1869 = sbr.rel (0) target = $region29
    $region28: #{tpu_custom_call.1} parent=1 // pred_region
      %1870 = dma.done [#allocation4], 8192
    $region29: #{tpu_custom_call.1} parent=1 // pred_fallthru
      _
    %1871 = vsyncpa [#allocation4], 1

</llo_original>
